<compile_context>
chip_gen: v7x
topology: tpu7x:2x2x1
jax: 0.10.0
libtpu: 0.0.40
codegen_flags: <defaults>
</compile_context>

<pallas_src>
import math
import functools

import jax
import jax.numpy as jnp
from jax.experimental import pallas as pl
from jax.experimental.pallas import tpu as pltpu

LANES = 128  # packed alpha slab lane width


# ----------------------------------------------------------------------------
# Fused per-batch-element kernel
# ----------------------------------------------------------------------------
def _fused_forward_kernel(*refs, num_heads, n_patches, n_mod, slab_rows):
    n_mod_refs = 2 + 3 * (n_mod - 1)
    (patch_ref, tokw_ref, tokb_ref, wtok_ref,
     ln1g_ref, ln1b_ref, wqkv_ref, bqkv_ref, wo_ref, bo_ref,
     ln2g_ref, ln2b_ref, w1_ref, b1_ref, w2_ref, b2_ref) = refs[:16]
    mod_refs = refs[16:16 + n_mod_refs]
    out_ref = refs[16 + n_mod_refs]

    f32 = jnp.float32
    bf16 = jnp.bfloat16
    D = wtok_ref.shape[1]
    hd = D // num_heads
    scale = 1.0 / math.sqrt(hd)
    T = n_patches + 1                     # real token count (data tokens + wtoken)
    T_pad = patch_ref.shape[1]            # sublane-padded token rows

    def layer_norm(v, g, b):
        mu = jnp.mean(v, axis=-1, keepdims=True)
        var = jnp.mean((v - mu) ** 2, axis=-1, keepdims=True)
        return (v - mu) * jax.lax.rsqrt(var + 1e-5) * g + b

    # --- tokenizer: patch embedding (bf16 operands, f32 accumulate) ------------
    dtok = (jnp.dot(patch_ref[0], tokw_ref[...], preferred_element_type=f32)
            + tokb_ref[...])                                     # (T_pad, D) f32

    # --- place the wtoken in row `n_patches` via an iota row-select ------------
    row_idx = jax.lax.broadcasted_iota(jnp.int32, (T_pad, D), 0)
    x = jnp.where(row_idx == n_patches, wtok_ref[...], dtok)     # (T_pad, D) f32

    # --- key mask for the sublane-pad rows (computed in-kernel, no HBM const) --
    if T_pad > T:
        kcol = jax.lax.broadcasted_iota(jnp.int32, (T_pad, T_pad), 1)
        kmask = jnp.where(kcol < T, 0.0, -1e30).astype(f32)
    else:
        kmask = None

    # --- pre-norm MHSA ---------------------------------------------------------
    xn = layer_norm(x, ln1g_ref[...], ln1b_ref[...])
    qkv = (jnp.dot(xn.astype(bf16), wqkv_ref[...], preferred_element_type=f32)
           + bqkv_ref[...])                                      # (T_pad, 3D) f32
    q, k, v = qkv[:, 0:D], qkv[:, D:2 * D], qkv[:, 2 * D:3 * D]

    lane = jax.lax.broadcasted_iota(jnp.int32, (T_pad, D), 1)
    attn = None                                                  # (T_pad, D) f32
    for h in range(num_heads):
        lo = h * hd
        qh = q[:, lo:lo + hd].astype(bf16)
        kh = k[:, lo:lo + hd].astype(bf16)
        s = jax.lax.dot_general(qh, kh, (((1,), (1,)), ((), ())),
                                preferred_element_type=f32) * scale
        if kmask is not None:
            s = s + kmask
        s = s - jnp.max(s, axis=-1, keepdims=True)
        p = jnp.exp(s)
        p = p * pl.reciprocal(jnp.sum(p, axis=-1, keepdims=True), approx=True)
        # head output lands directly in its lane slice of a (T_pad, D) buffer
        vh = jnp.where((lane >= lo) & (lane < lo + hd), v, 0.0).astype(bf16)
        h_out = jnp.dot(p.astype(bf16), vh, preferred_element_type=f32)
        attn = h_out if attn is None else attn + h_out
    # single full-K output projection (K = D, not K = hd per head)
    x = x + jnp.dot(attn.astype(bf16), wo_ref[...],
                    preferred_element_type=f32) + bo_ref[...]

    # --- MLP -------------------------------------------------------------------
    # NOTE: tanh-approx GELU (PyTorch default is exact erf; encoder here is a
    # synthetic stand-in, difference is ~1e-3 relative).
    xn2 = layer_norm(x, ln2g_ref[...], ln2b_ref[...])
    hid = jax.nn.gelu(jnp.dot(xn2.astype(bf16), w1_ref[...],
                              preferred_element_type=f32) + b1_ref[...])
    x = x + jnp.dot(hid.astype(bf16), w2_ref[...],
                    preferred_element_type=f32) + b2_ref[...]

    # --- z = last real token (static row slice, no selection matmul) -----------
    z = x[T - 1:T, :]                                            # (1, D) f32
    zb = z.astype(bf16)

    # --- modnet chain: cat([h_prev, z]) expressed as pre-split, lane-padded -----
    #     matmuls (weights zero-padded to 128 output lanes host-side, so every
    #     matmul and the final store are lane-dense and exact).
    h_rows = []
    h_prev = None
    ptr = 0
    for i in range(n_mod):
        if i == 0:
            w0_ref, b0_ref = mod_refs[0], mod_refs[1]
            ptr = 2
            h = jnp.dot(zb, w0_ref[...], preferred_element_type=f32) + b0_ref[...]
        else:
            wh_ref, wz_ref, b_ref = mod_refs[ptr], mod_refs[ptr + 1], mod_refs[ptr + 2]
            ptr += 3
            h = (jnp.dot(h_prev.astype(bf16), wh_ref[...], preferred_element_type=f32)
                 + jnp.dot(zb, wz_ref[...], preferred_element_type=f32)
                 + b_ref[...])
        h_rows.append(h)                                         # (1, 128) f32
        h_prev = h
    if slab_rows > n_mod:
        h_rows.append(jnp.zeros((slab_rows - n_mod, LANES), f32))
    # one lane-dense, sublane-full (slab_rows, 128) store
    out_ref[0] = jnp.concatenate(h_rows, axis=0).astype(out_ref.dtype)


# ----------------------------------------------------------------------------
# Parameter construction (deterministic, mirrors the torch __init__ shapes)
# ----------------------------------------------------------------------------
def init_wb(key, shape):
    """JAX mirror of the reference init_wb: -> (shape[0], shape[1])."""
    n_in, n_out = shape[0] - 1, shape[1]
    kw, kb = jax.random.split(key)
    bound = 1.0 / math.sqrt(n_in)      # kaiming_uniform(a=sqrt(5)) bound
    weight = jax.random.uniform(kw, (n_out, n_in), jnp.float32, -bound, bound)
    bias = jax.random.uniform(kb, (n_out, 1), jnp.float32, -bound, bound)
    return jnp.concatenate([weight, bias], axis=1).T


def linear_init(key, in_dim, out_dim):
    kw, kb = jax.random.split(key)
    bound = 1.0 / math.sqrt(in_dim)
    w = jax.random.uniform(kw, (in_dim, out_dim), jnp.float32, -bound, bound)
    b = jax.random.uniform(kb, (1, out_dim), jnp.float32, -bound, bound)
    return w, b


def build_params(key, *, dim, patch_dim, num_heads, mlp_hidden, param_shapes):
    del num_heads  # head count is a static kernel parameter
    keys = jax.random.split(key, 32)
    ki = iter(range(32))

    enc = {
        "ln1g": jnp.ones((1, dim), jnp.float32),
        "ln1b": jnp.zeros((1, dim), jnp.float32),
        "ln2g": jnp.ones((1, dim), jnp.float32),
        "ln2b": jnp.zeros((1, dim), jnp.float32),
    }
    wq, bq = linear_init(keys[next(ki)], dim, dim)
    wk, bk = linear_init(keys[next(ki)], dim, dim)
    wv, bv = linear_init(keys[next(ki)], dim, dim)
    enc["wqkv"] = jnp.concatenate([wq, wk, wv], axis=1)    # (D, 3D) fused QKV
    enc["bqkv"] = jnp.concatenate([bq, bk, bv], axis=1)    # (1, 3D)
    enc["wo"], enc["bo"] = linear_init(keys[next(ki)], dim, dim)
    enc["w1"], enc["b1"] = linear_init(keys[next(ki)], dim, mlp_hidden)
    enc["w2"], enc["b2"] = linear_init(keys[next(ki)], mlp_hidden, dim)

    tok_w, tok_b = linear_init(keys[next(ki)], patch_dim, dim)
    wtokens = jax.random.normal(keys[next(ki)], (1, dim), jnp.float32)

    base, mod = {}, {}
    last_dim = 0
    for name in sorted(param_shapes):
        shape = param_shapes[name]
        base[name] = init_wb(keys[next(ki)], shape)
        mod[name] = linear_init(keys[next(ki)], last_dim + dim, shape[1])
        last_dim = shape[1]

    return {"tok_w": tok_w, "tok_b": tok_b, "wtokens": wtokens,
            "enc": enc, "base": base, "mod": mod}


# ----------------------------------------------------------------------------
# Host-side glue
# ----------------------------------------------------------------------------
def patchify(data, patch_size):
    """(B, C, H, W) -> (B, num_patches, C*ps*ps)  (plain-JAX glue)."""
    B, C, H, W = data.shape
    ps = patch_size
    x = data.reshape(B, C, H // ps, ps, W // ps, ps)
    x = jnp.transpose(x, (0, 2, 4, 1, 3, 5))
    return x.reshape(B, (H // ps) * (W // ps), C * ps * ps)


def trans_mehta_forward(data, params, *, patch_size, num_heads, param_shapes):
    f32, bf16 = jnp.float32, jnp.bfloat16
    B = data.shape[0]
    patches = patchify(data, patch_size)                    # (B, P, pd) f32
    _, P, pd = patches.shape
    T = P + 1
    T_pad = ((T + 7) // 8) * 8                              # sublane-aligned rows
    patches_pad = jnp.pad(patches, ((0, 0), (0, T_pad - P), (0, 0))).astype(bf16)

    enc = params["enc"]
    D = params["wtokens"].shape[1]
    names = sorted(param_shapes)
    out_dims = tuple(int(param_shapes[n][1]) for n in names)
    n_mod = len(out_dims)
    slab_rows = ((n_mod + 7) // 8) * 8

    # modnet weights: split rows into [h_prev | z] (matches torch.cat([h_last, z]))
    # and zero-pad output lanes to 128 (exact: padded rows/cols contribute zero).
    mod_flat = []
    last_dim = 0
    for i, n in enumerate(names):
        w, b = params["mod"][n]                             # (last_dim + D, d), (1, d)
        d = out_dims[i]
        b_p = jnp.zeros((1, LANES), f32).at[:, :d].set(b)
        if i == 0:
            w_p = jnp.zeros((D, LANES), f32).at[:, :d].set(w).astype(bf16)
            mod_flat += [w_p, b_p]
        else:
            w_h = jnp.zeros((LANES, LANES), f32).at[:last_dim, :d].set(w[:last_dim]).astype(bf16)
            w_z = jnp.zeros((D, LANES), f32).at[:, :d].set(w[last_dim:]).astype(bf16)
            mod_flat += [w_h, w_z, b_p]
        last_dim = d

    inputs = [
        patches_pad,
        params["tok_w"].astype(bf16), params["tok_b"],
        params["wtokens"],
        enc["ln1g"], enc["ln1b"],
        enc["wqkv"].astype(bf16), enc["bqkv"],
        enc["wo"].astype(bf16), enc["bo"],
        enc["ln2g"], enc["ln2b"],
        enc["w1"].astype(bf16), enc["b1"],
        enc["w2"].astype(bf16), enc["b2"],
    ] + mod_flat

    in_specs = [pl.BlockSpec((1, T_pad, pd), lambda b: (b, 0, 0))]
    in_specs += [pl.BlockSpec(x.shape, lambda b: (0, 0)) for x in inputs[1:]]
    out_spec = pl.BlockSpec((1, slab_rows, LANES), lambda b: (b, 0, 0))
    out_shape = jax.ShapeDtypeStruct((B, slab_rows, LANES), f32)

    kernel = functools.partial(_fused_forward_kernel,
                               num_heads=num_heads, n_patches=P,
                               n_mod=n_mod, slab_rows=slab_rows)

    slab = pl.pallas_call(
        kernel,
        out_shape=out_shape,
        grid=(B,),
        in_specs=in_specs,
        out_specs=out_spec,
        compiler_params=pltpu.CompilerParams(
            dimension_semantics=("parallel",),
            vmem_limit_bytes=32 * 1024 * 1024),
    )(*inputs)

    out = {}
    for i, n in enumerate(names):
        base = params["base"][n]
        out[n] = jnp.broadcast_to(base[None], (B,) + base.shape)   # plain broadcast
        out["_" + n + "_alpha"] = slab[:, i, :out_dims[i]]
    return out


# ----------------------------------------------------------------------------
if __name__ == "__main__":
    B, C, H, W = 2, 3, 16, 16
    dim, patch_size, num_heads, mlp_hidden = 32, 8, 4, 64
    # hyponet: coord-MLP, depth 3: in=2, hidden=16, out=3 -> wb shapes (in+1, out)
    param_shapes = {"wb0": (3, 16), "wb1": (17, 16), "wb2": (17, 3)}

    key = jax.random.PRNGKey(0)
    k_data, k_params = jax.random.split(key)
    data = jax.random.normal(k_data, (B, C, H, W), jnp.float32)
    params = build_params(
        k_params,
        dim=dim,
        patch_dim=C * patch_size * patch_size,
        num_heads=num_heads,
        mlp_hidden=mlp_hidden,
        param_shapes=param_shapes,
    )

    fwd = jax.jit(functools.partial(
        trans_mehta_forward,
        patch_size=patch_size, num_heads=num_heads, param_shapes=param_shapes))

    hypo_params = jax.block_until_ready(fwd(data, params))

    # sanity: expected shapes + finiteness
    for name, shape in param_shapes.items():
        assert hypo_params[name].shape == (B,) + shape
        assert hypo_params["_" + name + "_alpha"].shape == (B, shape[1])
        assert bool(jnp.all(jnp.isfinite(hypo_params["_" + name + "_alpha"])))
    print("KERNEL_OK")
</pallas_src>

<mosaic_0001>
module attributes {stable_mosaic.version = 11 : i64} {
  func.func @_fused_forward_kernel(%arg0: i32, %arg1: memref<1x8x192xbf16, #tpu.memory_space<vmem>>, %arg2: memref<192x32xbf16, #tpu.memory_space<vmem>>, %arg3: memref<1x32xf32, #tpu.memory_space<vmem>>, %arg4: memref<1x32xf32, #tpu.memory_space<vmem>>, %arg5: memref<1x32xf32, #tpu.memory_space<vmem>>, %arg6: memref<1x32xf32, #tpu.memory_space<vmem>>, %arg7: memref<32x96xbf16, #tpu.memory_space<vmem>>, %arg8: memref<1x96xf32, #tpu.memory_space<vmem>>, %arg9: memref<32x32xbf16, #tpu.memory_space<vmem>>, %arg10: memref<1x32xf32, #tpu.memory_space<vmem>>, %arg11: memref<1x32xf32, #tpu.memory_space<vmem>>, %arg12: memref<1x32xf32, #tpu.memory_space<vmem>>, %arg13: memref<32x64xbf16, #tpu.memory_space<vmem>>, %arg14: memref<1x64xf32, #tpu.memory_space<vmem>>, %arg15: memref<64x32xbf16, #tpu.memory_space<vmem>>, %arg16: memref<1x32xf32, #tpu.memory_space<vmem>>, %arg17: memref<32x128xbf16, #tpu.memory_space<vmem>>, %arg18: memref<1x128xf32, #tpu.memory_space<vmem>>, %arg19: memref<128x128xbf16, #tpu.memory_space<vmem>>, %arg20: memref<32x128xbf16, #tpu.memory_space<vmem>>, %arg21: memref<1x128xf32, #tpu.memory_space<vmem>>, %arg22: memref<128x128xbf16, #tpu.memory_space<vmem>>, %arg23: memref<32x128xbf16, #tpu.memory_space<vmem>>, %arg24: memref<1x128xf32, #tpu.memory_space<vmem>>, %arg25: memref<1x8x128xf32, #tpu.memory_space<vmem>>) attributes {dimension_semantics = [#tpu.dimension_semantics<parallel>], iteration_bounds = array<i64: 2>, scalar_prefetch = 0 : i64, scratch_operands = 0 : i64, tpu.core_type = #tpu.core_type<tc>, window_params = [{transform_indices = @transform_0, window_bounds = array<i64: 1, 8, 192>}, {pipeline_mode = #tpu.pipeline_mode<synchronous>, transform_indices = @transform_1, window_bounds = array<i64: 192, 32>}, {pipeline_mode = #tpu.pipeline_mode<synchronous>, transform_indices = @transform_2, window_bounds = array<i64: 1, 32>}, {pipeline_mode = #tpu.pipeline_mode<synchronous>, transform_indices = @transform_3, window_bounds = array<i64: 1, 32>}, {pipeline_mode = #tpu.pipeline_mode<synchronous>, transform_indices = @transform_4, window_bounds = array<i64: 1, 32>}, {pipeline_mode = #tpu.pipeline_mode<synchronous>, transform_indices = @transform_5, window_bounds = array<i64: 1, 32>}, {pipeline_mode = #tpu.pipeline_mode<synchronous>, transform_indices = @transform_6, window_bounds = array<i64: 32, 96>}, {pipeline_mode = #tpu.pipeline_mode<synchronous>, transform_indices = @transform_7, window_bounds = array<i64: 1, 96>}, {pipeline_mode = #tpu.pipeline_mode<synchronous>, transform_indices = @transform_8, window_bounds = array<i64: 32, 32>}, {pipeline_mode = #tpu.pipeline_mode<synchronous>, transform_indices = @transform_9, window_bounds = array<i64: 1, 32>}, {pipeline_mode = #tpu.pipeline_mode<synchronous>, transform_indices = @transform_10, window_bounds = array<i64: 1, 32>}, {pipeline_mode = #tpu.pipeline_mode<synchronous>, transform_indices = @transform_11, window_bounds = array<i64: 1, 32>}, {pipeline_mode = #tpu.pipeline_mode<synchronous>, transform_indices = @transform_12, window_bounds = array<i64: 32, 64>}, {pipeline_mode = #tpu.pipeline_mode<synchronous>, transform_indices = @transform_13, window_bounds = array<i64: 1, 64>}, {pipeline_mode = #tpu.pipeline_mode<synchronous>, transform_indices = @transform_14, window_bounds = array<i64: 64, 32>}, {pipeline_mode = #tpu.pipeline_mode<synchronous>, transform_indices = @transform_15, window_bounds = array<i64: 1, 32>}, {pipeline_mode = #tpu.pipeline_mode<synchronous>, transform_indices = @transform_16, window_bounds = array<i64: 32, 128>}, {pipeline_mode = #tpu.pipeline_mode<synchronous>, transform_indices = @transform_17, window_bounds = array<i64: 1, 128>}, {pipeline_mode = #tpu.pipeline_mode<synchronous>, transform_indices = @transform_18, window_bounds = array<i64: 128, 128>}, {pipeline_mode = #tpu.pipeline_mode<synchronous>, transform_indices = @transform_19, window_bounds = array<i64: 32, 128>}, {pipeline_mode = #tpu.pipeline_mode<synchronous>, transform_indices = @transform_20, window_bounds = array<i64: 1, 128>}, {pipeline_mode = #tpu.pipeline_mode<synchronous>, transform_indices = @transform_21, window_bounds = array<i64: 128, 128>}, {pipeline_mode = #tpu.pipeline_mode<synchronous>, transform_indices = @transform_22, window_bounds = array<i64: 32, 128>}, {pipeline_mode = #tpu.pipeline_mode<synchronous>, transform_indices = @transform_23, window_bounds = array<i64: 1, 128>}, {transform_indices = @transform_24, window_bounds = array<i64: 1, 8, 128>}]} {
    %c0 = arith.constant 0 : index
    %c0_0 = arith.constant 0 : index
    %c0_1 = arith.constant 0 : index
    %0 = vector.load %arg1[%c0, %c0_0, %c0_1] : memref<1x8x192xbf16, #tpu.memory_space<vmem>>, vector<1x8x192xbf16>
    %1 = vector.shape_cast %0 : vector<1x8x192xbf16> to vector<8x192xbf16>
    %c0_2 = arith.constant 0 : index
    %c0_3 = arith.constant 0 : index
    %2 = vector.load %arg2[%c0_2, %c0_3] : memref<192x32xbf16, #tpu.memory_space<vmem>>, vector<192x32xbf16>
    %cst = arith.constant dense<0.000000e+00> : vector<8x32xf32>
    %3 = tpu.matmul %1, %2, %cst {dimension_numbers = #tpu.dot_dimension_numbers<[1], [0], [0], [1], [0, 0, 1, 1], [], []>} : vector<8x192xbf16>, vector<192x32xbf16>, vector<8x32xf32> -> vector<8x32xf32>
    %c0_4 = arith.constant 0 : index
    %c0_5 = arith.constant 0 : index
    %4 = vector.load %arg3[%c0_4, %c0_5] : memref<1x32xf32, #tpu.memory_space<vmem>>, vector<1x32xf32>
    %5 = vector.broadcast %4 : vector<1x32xf32> to vector<8x32xf32>
    %6 = arith.addf %3, %5 : vector<8x32xf32>
    %7 = tpu.iota {dimensions = array<i32: 0>} : vector<8x32xi32>
    %c4_i32 = arith.constant 4 : i32
    %8 = vector.broadcast %c4_i32 : i32 to vector<8x32xi32>
    %9 = arith.cmpi eq, %7, %8 : vector<8x32xi32>
    %c0_6 = arith.constant 0 : index
    %c0_7 = arith.constant 0 : index
    %10 = vector.load %arg4[%c0_6, %c0_7] : memref<1x32xf32, #tpu.memory_space<vmem>>, vector<1x32xf32>
    %11 = vector.shape_cast %10 : vector<1x32xf32> to vector<1x32xf32>
    %12 = vector.broadcast %11 : vector<1x32xf32> to vector<8x32xf32>
    %13 = arith.select %9, %12, %6 : vector<8x32xi1>, vector<8x32xf32>
    %14 = tpu.iota {dimensions = array<i32: 1>} : vector<8x8xi32>
    %c5_i32 = arith.constant 5 : i32
    %15 = vector.broadcast %c5_i32 : i32 to vector<8x8xi32>
    %16 = arith.cmpi slt, %14, %15 : vector<8x8xi32>
    %cst_8 = arith.constant 0.000000e+00 : f32
    %cst_9 = arith.constant -1.000000e+30 : f32
    %17 = vector.broadcast %cst_8 : f32 to vector<8x8xf32>
    %18 = vector.broadcast %cst_9 : f32 to vector<8x8xf32>
    %19 = arith.select %16, %17, %18 : vector<8x8xi1>, vector<8x8xf32>
    %c0_10 = arith.constant 0 : index
    %c0_11 = arith.constant 0 : index
    %20 = vector.load %arg5[%c0_10, %c0_11] : memref<1x32xf32, #tpu.memory_space<vmem>>, vector<1x32xf32>
    %c0_12 = arith.constant 0 : index
    %c0_13 = arith.constant 0 : index
    %21 = vector.load %arg6[%c0_12, %c0_13] : memref<1x32xf32, #tpu.memory_space<vmem>>, vector<1x32xf32>
    %cst_14 = arith.constant dense<0.000000e+00> : vector<8xf32>
    %22 = vector.multi_reduction <add>, %13, %cst_14 [1] : vector<8x32xf32> to vector<8xf32>
    %23 = vector.shape_cast %22 : vector<8xf32> to vector<8x1xf32>
    %cst_15 = arith.constant 3.200000e+01 : f32
    %24 = vector.broadcast %cst_15 : f32 to vector<8x1xf32>
    %25 = arith.divf %23, %24 : vector<8x1xf32>
    %26 = vector.broadcast %25 : vector<8x1xf32> to vector<8x32xf32>
    %27 = arith.subf %13, %26 : vector<8x32xf32>
    %28 = arith.mulf %27, %27 : vector<8x32xf32>
    %cst_16 = arith.constant dense<0.000000e+00> : vector<8xf32>
    %29 = vector.multi_reduction <add>, %28, %cst_16 [1] : vector<8x32xf32> to vector<8xf32>
    %30 = vector.shape_cast %29 : vector<8xf32> to vector<8x1xf32>
    %cst_17 = arith.constant 3.200000e+01 : f32
    %31 = vector.broadcast %cst_17 : f32 to vector<8x1xf32>
    %32 = arith.divf %30, %31 : vector<8x1xf32>
    %33 = vector.broadcast %25 : vector<8x1xf32> to vector<8x32xf32>
    %34 = arith.subf %13, %33 : vector<8x32xf32>
    %cst_18 = arith.constant 9.99999974E-6 : f32
    %35 = vector.broadcast %cst_18 : f32 to vector<8x1xf32>
    %36 = arith.addf %32, %35 : vector<8x1xf32>
    %37 = math.rsqrt %36 : vector<8x1xf32>
    %38 = vector.broadcast %37 : vector<8x1xf32> to vector<8x32xf32>
    %39 = arith.mulf %34, %38 : vector<8x32xf32>
    %40 = vector.broadcast %20 : vector<1x32xf32> to vector<8x32xf32>
    %41 = arith.mulf %39, %40 : vector<8x32xf32>
    %42 = vector.broadcast %21 : vector<1x32xf32> to vector<8x32xf32>
    %43 = arith.addf %41, %42 : vector<8x32xf32>
    %44 = arith.truncf %43 : vector<8x32xf32> to vector<8x32xbf16>
    %c0_19 = arith.constant 0 : index
    %c0_20 = arith.constant 0 : index
    %45 = vector.load %arg7[%c0_19, %c0_20] : memref<32x96xbf16, #tpu.memory_space<vmem>>, vector<32x96xbf16>
    %cst_21 = arith.constant dense<0.000000e+00> : vector<8x96xf32>
    %46 = tpu.matmul %44, %45, %cst_21 {dimension_numbers = #tpu.dot_dimension_numbers<[1], [0], [0], [1], [0, 0, 1, 1], [], []>} : vector<8x32xbf16>, vector<32x96xbf16>, vector<8x96xf32> -> vector<8x96xf32>
    %c0_22 = arith.constant 0 : index
    %c0_23 = arith.constant 0 : index
    %47 = vector.load %arg8[%c0_22, %c0_23] : memref<1x96xf32, #tpu.memory_space<vmem>>, vector<1x96xf32>
    %48 = vector.broadcast %47 : vector<1x96xf32> to vector<8x96xf32>
    %49 = arith.addf %46, %48 : vector<8x96xf32>
    %50 = vector.extract_strided_slice %49 {offsets = [0, 0], sizes = [8, 32], strides = [1, 1]} : vector<8x96xf32> to vector<8x32xf32>
    %51 = vector.extract_strided_slice %49 {offsets = [0, 32], sizes = [8, 32], strides = [1, 1]} : vector<8x96xf32> to vector<8x32xf32>
    %52 = vector.extract_strided_slice %49 {offsets = [0, 64], sizes = [8, 32], strides = [1, 1]} : vector<8x96xf32> to vector<8x32xf32>
    %53 = tpu.iota {dimensions = array<i32: 1>} : vector<8x32xi32>
    %54 = vector.extract_strided_slice %50 {offsets = [0, 0], sizes = [8, 8], strides = [1, 1]} : vector<8x32xf32> to vector<8x8xf32>
    %55 = arith.truncf %54 : vector<8x8xf32> to vector<8x8xbf16>
    %56 = vector.extract_strided_slice %51 {offsets = [0, 0], sizes = [8, 8], strides = [1, 1]} : vector<8x32xf32> to vector<8x8xf32>
    %57 = arith.truncf %56 : vector<8x8xf32> to vector<8x8xbf16>
    %cst_24 = arith.constant dense<0.000000e+00> : vector<8x8xf32>
    %58 = tpu.matmul %55, %57, %cst_24 {dimension_numbers = #tpu.dot_dimension_numbers<[1], [1], [0], [0], [0, 0, 1, 0], [], []>} : vector<8x8xbf16>, vector<8x8xbf16>, vector<8x8xf32> -> vector<8x8xf32>
    %cst_25 = arith.constant 0.353553385 : f32
    %59 = vector.broadcast %cst_25 : f32 to vector<8x8xf32>
    %60 = arith.mulf %58, %59 : vector<8x8xf32>
    %61 = arith.addf %60, %19 : vector<8x8xf32>
    %cst_26 = arith.constant dense<0xFF800000> : vector<8xf32>
    %62 = vector.multi_reduction <maximumf>, %61, %cst_26 [1] : vector<8x8xf32> to vector<8xf32>
    %63 = vector.shape_cast %62 : vector<8xf32> to vector<8x1xf32>
    %64 = vector.broadcast %63 : vector<8x1xf32> to vector<8x8xf32>
    %65 = arith.subf %61, %64 : vector<8x8xf32>
    %66 = math.exp %65 : vector<8x8xf32>
    %cst_27 = arith.constant dense<0.000000e+00> : vector<8xf32>
    %67 = vector.multi_reduction <add>, %66, %cst_27 [1] : vector<8x8xf32> to vector<8xf32>
    %68 = vector.shape_cast %67 : vector<8xf32> to vector<8x1xf32>
    %69 = tpu.reciprocal %68 {approx = true} : vector<8x1xf32> -> vector<8x1xf32>
    %70 = vector.broadcast %69 : vector<8x1xf32> to vector<8x8xf32>
    %71 = arith.mulf %66, %70 : vector<8x8xf32>
    %c0_i32 = arith.constant 0 : i32
    %72 = vector.broadcast %c0_i32 : i32 to vector<8x32xi32>
    %73 = arith.cmpi sge, %53, %72 : vector<8x32xi32>
    %c8_i32 = arith.constant 8 : i32
    %74 = vector.broadcast %c8_i32 : i32 to vector<8x32xi32>
    %75 = arith.cmpi slt, %53, %74 : vector<8x32xi32>
    %76 = arith.andi %73, %75 : vector<8x32xi1>
    %cst_28 = arith.constant 0.000000e+00 : f32
    %77 = vector.broadcast %cst_28 : f32 to vector<8x32xf32>
    %78 = arith.select %76, %52, %77 : vector<8x32xi1>, vector<8x32xf32>
    %79 = arith.truncf %78 : vector<8x32xf32> to vector<8x32xbf16>
    %80 = arith.truncf %71 : vector<8x8xf32> to vector<8x8xbf16>
    %cst_29 = arith.constant dense<0.000000e+00> : vector<8x32xf32>
    %81 = tpu.matmul %80, %79, %cst_29 {dimension_numbers = #tpu.dot_dimension_numbers<[1], [0], [0], [1], [0, 0, 1, 1], [], []>} : vector<8x8xbf16>, vector<8x32xbf16>, vector<8x32xf32> -> vector<8x32xf32>
    %82 = vector.extract_strided_slice %50 {offsets = [0, 8], sizes = [8, 8], strides = [1, 1]} : vector<8x32xf32> to vector<8x8xf32>
    %83 = arith.truncf %82 : vector<8x8xf32> to vector<8x8xbf16>
    %84 = vector.extract_strided_slice %51 {offsets = [0, 8], sizes = [8, 8], strides = [1, 1]} : vector<8x32xf32> to vector<8x8xf32>
    %85 = arith.truncf %84 : vector<8x8xf32> to vector<8x8xbf16>
    %cst_30 = arith.constant dense<0.000000e+00> : vector<8x8xf32>
    %86 = tpu.matmul %83, %85, %cst_30 {dimension_numbers = #tpu.dot_dimension_numbers<[1], [1], [0], [0], [0, 0, 1, 0], [], []>} : vector<8x8xbf16>, vector<8x8xbf16>, vector<8x8xf32> -> vector<8x8xf32>
    %cst_31 = arith.constant 0.353553385 : f32
    %87 = vector.broadcast %cst_31 : f32 to vector<8x8xf32>
    %88 = arith.mulf %86, %87 : vector<8x8xf32>
    %89 = arith.addf %88, %19 : vector<8x8xf32>
    %cst_32 = arith.constant dense<0xFF800000> : vector<8xf32>
    %90 = vector.multi_reduction <maximumf>, %89, %cst_32 [1] : vector<8x8xf32> to vector<8xf32>
    %91 = vector.shape_cast %90 : vector<8xf32> to vector<8x1xf32>
    %92 = vector.broadcast %91 : vector<8x1xf32> to vector<8x8xf32>
    %93 = arith.subf %89, %92 : vector<8x8xf32>
    %94 = math.exp %93 : vector<8x8xf32>
    %cst_33 = arith.constant dense<0.000000e+00> : vector<8xf32>
    %95 = vector.multi_reduction <add>, %94, %cst_33 [1] : vector<8x8xf32> to vector<8xf32>
    %96 = vector.shape_cast %95 : vector<8xf32> to vector<8x1xf32>
    %97 = tpu.reciprocal %96 {approx = true} : vector<8x1xf32> -> vector<8x1xf32>
    %98 = vector.broadcast %97 : vector<8x1xf32> to vector<8x8xf32>
    %99 = arith.mulf %94, %98 : vector<8x8xf32>
    %c8_i32_34 = arith.constant 8 : i32
    %100 = vector.broadcast %c8_i32_34 : i32 to vector<8x32xi32>
    %101 = arith.cmpi sge, %53, %100 : vector<8x32xi32>
    %c16_i32 = arith.constant 16 : i32
    %102 = vector.broadcast %c16_i32 : i32 to vector<8x32xi32>
    %103 = arith.cmpi slt, %53, %102 : vector<8x32xi32>
    %104 = arith.andi %101, %103 : vector<8x32xi1>
    %cst_35 = arith.constant 0.000000e+00 : f32
    %105 = vector.broadcast %cst_35 : f32 to vector<8x32xf32>
    %106 = arith.select %104, %52, %105 : vector<8x32xi1>, vector<8x32xf32>
    %107 = arith.truncf %106 : vector<8x32xf32> to vector<8x32xbf16>
    %108 = arith.truncf %99 : vector<8x8xf32> to vector<8x8xbf16>
    %cst_36 = arith.constant dense<0.000000e+00> : vector<8x32xf32>
    %109 = tpu.matmul %108, %107, %cst_36 {dimension_numbers = #tpu.dot_dimension_numbers<[1], [0], [0], [1], [0, 0, 1, 1], [], []>} : vector<8x8xbf16>, vector<8x32xbf16>, vector<8x32xf32> -> vector<8x32xf32>
    %110 = arith.addf %81, %109 : vector<8x32xf32>
    %111 = vector.extract_strided_slice %50 {offsets = [0, 16], sizes = [8, 8], strides = [1, 1]} : vector<8x32xf32> to vector<8x8xf32>
    %112 = arith.truncf %111 : vector<8x8xf32> to vector<8x8xbf16>
    %113 = vector.extract_strided_slice %51 {offsets = [0, 16], sizes = [8, 8], strides = [1, 1]} : vector<8x32xf32> to vector<8x8xf32>
    %114 = arith.truncf %113 : vector<8x8xf32> to vector<8x8xbf16>
    %cst_37 = arith.constant dense<0.000000e+00> : vector<8x8xf32>
    %115 = tpu.matmul %112, %114, %cst_37 {dimension_numbers = #tpu.dot_dimension_numbers<[1], [1], [0], [0], [0, 0, 1, 0], [], []>} : vector<8x8xbf16>, vector<8x8xbf16>, vector<8x8xf32> -> vector<8x8xf32>
    %cst_38 = arith.constant 0.353553385 : f32
    %116 = vector.broadcast %cst_38 : f32 to vector<8x8xf32>
    %117 = arith.mulf %115, %116 : vector<8x8xf32>
    %118 = arith.addf %117, %19 : vector<8x8xf32>
    %cst_39 = arith.constant dense<0xFF800000> : vector<8xf32>
    %119 = vector.multi_reduction <maximumf>, %118, %cst_39 [1] : vector<8x8xf32> to vector<8xf32>
    %120 = vector.shape_cast %119 : vector<8xf32> to vector<8x1xf32>
    %121 = vector.broadcast %120 : vector<8x1xf32> to vector<8x8xf32>
    %122 = arith.subf %118, %121 : vector<8x8xf32>
    %123 = math.exp %122 : vector<8x8xf32>
    %cst_40 = arith.constant dense<0.000000e+00> : vector<8xf32>
    %124 = vector.multi_reduction <add>, %123, %cst_40 [1] : vector<8x8xf32> to vector<8xf32>
    %125 = vector.shape_cast %124 : vector<8xf32> to vector<8x1xf32>
    %126 = tpu.reciprocal %125 {approx = true} : vector<8x1xf32> -> vector<8x1xf32>
    %127 = vector.broadcast %126 : vector<8x1xf32> to vector<8x8xf32>
    %128 = arith.mulf %123, %127 : vector<8x8xf32>
    %c16_i32_41 = arith.constant 16 : i32
    %129 = vector.broadcast %c16_i32_41 : i32 to vector<8x32xi32>
    %130 = arith.cmpi sge, %53, %129 : vector<8x32xi32>
    %c24_i32 = arith.constant 24 : i32
    %131 = vector.broadcast %c24_i32 : i32 to vector<8x32xi32>
    %132 = arith.cmpi slt, %53, %131 : vector<8x32xi32>
    %133 = arith.andi %130, %132 : vector<8x32xi1>
    %cst_42 = arith.constant 0.000000e+00 : f32
    %134 = vector.broadcast %cst_42 : f32 to vector<8x32xf32>
    %135 = arith.select %133, %52, %134 : vector<8x32xi1>, vector<8x32xf32>
    %136 = arith.truncf %135 : vector<8x32xf32> to vector<8x32xbf16>
    %137 = arith.truncf %128 : vector<8x8xf32> to vector<8x8xbf16>
    %cst_43 = arith.constant dense<0.000000e+00> : vector<8x32xf32>
    %138 = tpu.matmul %137, %136, %cst_43 {dimension_numbers = #tpu.dot_dimension_numbers<[1], [0], [0], [1], [0, 0, 1, 1], [], []>} : vector<8x8xbf16>, vector<8x32xbf16>, vector<8x32xf32> -> vector<8x32xf32>
    %139 = arith.addf %110, %138 : vector<8x32xf32>
    %140 = vector.extract_strided_slice %50 {offsets = [0, 24], sizes = [8, 8], strides = [1, 1]} : vector<8x32xf32> to vector<8x8xf32>
    %141 = arith.truncf %140 : vector<8x8xf32> to vector<8x8xbf16>
    %142 = vector.extract_strided_slice %51 {offsets = [0, 24], sizes = [8, 8], strides = [1, 1]} : vector<8x32xf32> to vector<8x8xf32>
    %143 = arith.truncf %142 : vector<8x8xf32> to vector<8x8xbf16>
    %cst_44 = arith.constant dense<0.000000e+00> : vector<8x8xf32>
    %144 = tpu.matmul %141, %143, %cst_44 {dimension_numbers = #tpu.dot_dimension_numbers<[1], [1], [0], [0], [0, 0, 1, 0], [], []>} : vector<8x8xbf16>, vector<8x8xbf16>, vector<8x8xf32> -> vector<8x8xf32>
    %cst_45 = arith.constant 0.353553385 : f32
    %145 = vector.broadcast %cst_45 : f32 to vector<8x8xf32>
    %146 = arith.mulf %144, %145 : vector<8x8xf32>
    %147 = arith.addf %146, %19 : vector<8x8xf32>
    %cst_46 = arith.constant dense<0xFF800000> : vector<8xf32>
    %148 = vector.multi_reduction <maximumf>, %147, %cst_46 [1] : vector<8x8xf32> to vector<8xf32>
    %149 = vector.shape_cast %148 : vector<8xf32> to vector<8x1xf32>
    %150 = vector.broadcast %149 : vector<8x1xf32> to vector<8x8xf32>
    %151 = arith.subf %147, %150 : vector<8x8xf32>
    %152 = math.exp %151 : vector<8x8xf32>
    %cst_47 = arith.constant dense<0.000000e+00> : vector<8xf32>
    %153 = vector.multi_reduction <add>, %152, %cst_47 [1] : vector<8x8xf32> to vector<8xf32>
    %154 = vector.shape_cast %153 : vector<8xf32> to vector<8x1xf32>
    %155 = tpu.reciprocal %154 {approx = true} : vector<8x1xf32> -> vector<8x1xf32>
    %156 = vector.broadcast %155 : vector<8x1xf32> to vector<8x8xf32>
    %157 = arith.mulf %152, %156 : vector<8x8xf32>
    %c24_i32_48 = arith.constant 24 : i32
    %158 = vector.broadcast %c24_i32_48 : i32 to vector<8x32xi32>
    %159 = arith.cmpi sge, %53, %158 : vector<8x32xi32>
    %c32_i32 = arith.constant 32 : i32
    %160 = vector.broadcast %c32_i32 : i32 to vector<8x32xi32>
    %161 = arith.cmpi slt, %53, %160 : vector<8x32xi32>
    %162 = arith.andi %159, %161 : vector<8x32xi1>
    %cst_49 = arith.constant 0.000000e+00 : f32
    %163 = vector.broadcast %cst_49 : f32 to vector<8x32xf32>
    %164 = arith.select %162, %52, %163 : vector<8x32xi1>, vector<8x32xf32>
    %165 = arith.truncf %164 : vector<8x32xf32> to vector<8x32xbf16>
    %166 = arith.truncf %157 : vector<8x8xf32> to vector<8x8xbf16>
    %cst_50 = arith.constant dense<0.000000e+00> : vector<8x32xf32>
    %167 = tpu.matmul %166, %165, %cst_50 {dimension_numbers = #tpu.dot_dimension_numbers<[1], [0], [0], [1], [0, 0, 1, 1], [], []>} : vector<8x8xbf16>, vector<8x32xbf16>, vector<8x32xf32> -> vector<8x32xf32>
    %168 = arith.addf %139, %167 : vector<8x32xf32>
    %169 = arith.truncf %168 : vector<8x32xf32> to vector<8x32xbf16>
    %c0_51 = arith.constant 0 : index
    %c0_52 = arith.constant 0 : index
    %170 = vector.load %arg9[%c0_51, %c0_52] : memref<32x32xbf16, #tpu.memory_space<vmem>>, vector<32x32xbf16>
    %cst_53 = arith.constant dense<0.000000e+00> : vector<8x32xf32>
    %171 = tpu.matmul %169, %170, %cst_53 {dimension_numbers = #tpu.dot_dimension_numbers<[1], [0], [0], [1], [0, 0, 1, 1], [], []>} : vector<8x32xbf16>, vector<32x32xbf16>, vector<8x32xf32> -> vector<8x32xf32>
    %172 = arith.addf %13, %171 : vector<8x32xf32>
    %c0_54 = arith.constant 0 : index
    %c0_55 = arith.constant 0 : index
    %173 = vector.load %arg10[%c0_54, %c0_55] : memref<1x32xf32, #tpu.memory_space<vmem>>, vector<1x32xf32>
    %174 = vector.broadcast %173 : vector<1x32xf32> to vector<8x32xf32>
    %175 = arith.addf %172, %174 : vector<8x32xf32>
    %c0_56 = arith.constant 0 : index
    %c0_57 = arith.constant 0 : index
    %176 = vector.load %arg11[%c0_56, %c0_57] : memref<1x32xf32, #tpu.memory_space<vmem>>, vector<1x32xf32>
    %c0_58 = arith.constant 0 : index
    %c0_59 = arith.constant 0 : index
    %177 = vector.load %arg12[%c0_58, %c0_59] : memref<1x32xf32, #tpu.memory_space<vmem>>, vector<1x32xf32>
    %cst_60 = arith.constant dense<0.000000e+00> : vector<8xf32>
    %178 = vector.multi_reduction <add>, %175, %cst_60 [1] : vector<8x32xf32> to vector<8xf32>
    %179 = vector.shape_cast %178 : vector<8xf32> to vector<8x1xf32>
    %cst_61 = arith.constant 3.200000e+01 : f32
    %180 = vector.broadcast %cst_61 : f32 to vector<8x1xf32>
    %181 = arith.divf %179, %180 : vector<8x1xf32>
    %182 = vector.broadcast %181 : vector<8x1xf32> to vector<8x32xf32>
    %183 = arith.subf %175, %182 : vector<8x32xf32>
    %184 = arith.mulf %183, %183 : vector<8x32xf32>
    %cst_62 = arith.constant dense<0.000000e+00> : vector<8xf32>
    %185 = vector.multi_reduction <add>, %184, %cst_62 [1] : vector<8x32xf32> to vector<8xf32>
    %186 = vector.shape_cast %185 : vector<8xf32> to vector<8x1xf32>
    %cst_63 = arith.constant 3.200000e+01 : f32
    %187 = vector.broadcast %cst_63 : f32 to vector<8x1xf32>
    %188 = arith.divf %186, %187 : vector<8x1xf32>
    %189 = vector.broadcast %181 : vector<8x1xf32> to vector<8x32xf32>
    %190 = arith.subf %175, %189 : vector<8x32xf32>
    %cst_64 = arith.constant 9.99999974E-6 : f32
    %191 = vector.broadcast %cst_64 : f32 to vector<8x1xf32>
    %192 = arith.addf %188, %191 : vector<8x1xf32>
    %193 = math.rsqrt %192 : vector<8x1xf32>
    %194 = vector.broadcast %193 : vector<8x1xf32> to vector<8x32xf32>
    %195 = arith.mulf %190, %194 : vector<8x32xf32>
    %196 = vector.broadcast %176 : vector<1x32xf32> to vector<8x32xf32>
    %197 = arith.mulf %195, %196 : vector<8x32xf32>
    %198 = vector.broadcast %177 : vector<1x32xf32> to vector<8x32xf32>
    %199 = arith.addf %197, %198 : vector<8x32xf32>
    %200 = arith.truncf %199 : vector<8x32xf32> to vector<8x32xbf16>
    %c0_65 = arith.constant 0 : index
    %c0_66 = arith.constant 0 : index
    %201 = vector.load %arg13[%c0_65, %c0_66] : memref<32x64xbf16, #tpu.memory_space<vmem>>, vector<32x64xbf16>
    %cst_67 = arith.constant dense<0.000000e+00> : vector<8x64xf32>
    %202 = tpu.matmul %200, %201, %cst_67 {dimension_numbers = #tpu.dot_dimension_numbers<[1], [0], [0], [1], [0, 0, 1, 1], [], []>} : vector<8x32xbf16>, vector<32x64xbf16>, vector<8x64xf32> -> vector<8x64xf32>
    %c0_68 = arith.constant 0 : index
    %c0_69 = arith.constant 0 : index
    %203 = vector.load %arg14[%c0_68, %c0_69] : memref<1x64xf32, #tpu.memory_space<vmem>>, vector<1x64xf32>
    %204 = vector.broadcast %203 : vector<1x64xf32> to vector<8x64xf32>
    %205 = arith.addf %202, %204 : vector<8x64xf32>
    %206 = arith.mulf %205, %205 : vector<8x64xf32>
    %207 = arith.mulf %205, %206 : vector<8x64xf32>
    %cst_70 = arith.constant 4.471500e-02 : f32
    %208 = vector.broadcast %cst_70 : f32 to vector<8x64xf32>
    %209 = arith.mulf %208, %207 : vector<8x64xf32>
    %210 = arith.addf %205, %209 : vector<8x64xf32>
    %cst_71 = arith.constant 0.797884583 : f32
    %211 = vector.broadcast %cst_71 : f32 to vector<8x64xf32>
    %212 = arith.mulf %211, %210 : vector<8x64xf32>
    %213 = math.tanh %212 : vector<8x64xf32>
    %cst_72 = arith.constant 1.000000e+00 : f32
    %214 = vector.broadcast %cst_72 : f32 to vector<8x64xf32>
    %215 = arith.addf %214, %213 : vector<8x64xf32>
    %cst_73 = arith.constant 5.000000e-01 : f32
    %216 = vector.broadcast %cst_73 : f32 to vector<8x64xf32>
    %217 = arith.mulf %216, %215 : vector<8x64xf32>
    %218 = arith.mulf %205, %217 : vector<8x64xf32>
    %219 = arith.truncf %218 : vector<8x64xf32> to vector<8x64xbf16>
    %c0_74 = arith.constant 0 : index
    %c0_75 = arith.constant 0 : index
    %220 = vector.load %arg15[%c0_74, %c0_75] : memref<64x32xbf16, #tpu.memory_space<vmem>>, vector<64x32xbf16>
    %cst_76 = arith.constant dense<0.000000e+00> : vector<8x32xf32>
    %221 = tpu.matmul %219, %220, %cst_76 {dimension_numbers = #tpu.dot_dimension_numbers<[1], [0], [0], [1], [0, 0, 1, 1], [], []>} : vector<8x64xbf16>, vector<64x32xbf16>, vector<8x32xf32> -> vector<8x32xf32>
    %222 = arith.addf %175, %221 : vector<8x32xf32>
    %c0_77 = arith.constant 0 : index
    %c0_78 = arith.constant 0 : index
    %223 = vector.load %arg16[%c0_77, %c0_78] : memref<1x32xf32, #tpu.memory_space<vmem>>, vector<1x32xf32>
    %224 = vector.broadcast %223 : vector<1x32xf32> to vector<8x32xf32>
    %225 = arith.addf %222, %224 : vector<8x32xf32>
    %226 = vector.extract_strided_slice %225 {offsets = [4, 0], sizes = [1, 32], strides = [1, 1]} : vector<8x32xf32> to vector<1x32xf32>
    %227 = arith.truncf %226 : vector<1x32xf32> to vector<1x32xbf16>
    %c0_79 = arith.constant 0 : index
    %c0_80 = arith.constant 0 : index
    %228 = vector.load %arg17[%c0_79, %c0_80] : memref<32x128xbf16, #tpu.memory_space<vmem>>, vector<32x128xbf16>
    %cst_81 = arith.constant dense<0.000000e+00> : vector<1x128xf32>
    %229 = tpu.matmul %227, %228, %cst_81 {dimension_numbers = #tpu.dot_dimension_numbers<[1], [0], [0], [1], [0, 0, 1, 1], [], []>} : vector<1x32xbf16>, vector<32x128xbf16>, vector<1x128xf32> -> vector<1x128xf32>
    %c0_82 = arith.constant 0 : index
    %c0_83 = arith.constant 0 : index
    %230 = vector.load %arg18[%c0_82, %c0_83] : memref<1x128xf32, #tpu.memory_space<vmem>>, vector<1x128xf32>
    %231 = arith.addf %229, %230 : vector<1x128xf32>
    %232 = arith.truncf %231 : vector<1x128xf32> to vector<1x128xbf16>
    %c0_84 = arith.constant 0 : index
    %c0_85 = arith.constant 0 : index
    %233 = vector.load %arg19[%c0_84, %c0_85] : memref<128x128xbf16, #tpu.memory_space<vmem>>, vector<128x128xbf16>
    %cst_86 = arith.constant dense<0.000000e+00> : vector<1x128xf32>
    %234 = tpu.matmul %232, %233, %cst_86 {dimension_numbers = #tpu.dot_dimension_numbers<[1], [0], [0], [1], [0, 0, 1, 1], [], []>} : vector<1x128xbf16>, vector<128x128xbf16>, vector<1x128xf32> -> vector<1x128xf32>
    %c0_87 = arith.constant 0 : index
    %c0_88 = arith.constant 0 : index
    %235 = vector.load %arg20[%c0_87, %c0_88] : memref<32x128xbf16, #tpu.memory_space<vmem>>, vector<32x128xbf16>
    %cst_89 = arith.constant dense<0.000000e+00> : vector<1x128xf32>
    %236 = tpu.matmul %227, %235, %cst_89 {dimension_numbers = #tpu.dot_dimension_numbers<[1], [0], [0], [1], [0, 0, 1, 1], [], []>} : vector<1x32xbf16>, vector<32x128xbf16>, vector<1x128xf32> -> vector<1x128xf32>
    %237 = arith.addf %234, %236 : vector<1x128xf32>
    %c0_90 = arith.constant 0 : index
    %c0_91 = arith.constant 0 : index
    %238 = vector.load %arg21[%c0_90, %c0_91] : memref<1x128xf32, #tpu.memory_space<vmem>>, vector<1x128xf32>
    %239 = arith.addf %237, %238 : vector<1x128xf32>
    %240 = arith.truncf %239 : vector<1x128xf32> to vector<1x128xbf16>
    %c0_92 = arith.constant 0 : index
    %c0_93 = arith.constant 0 : index
    %241 = vector.load %arg22[%c0_92, %c0_93] : memref<128x128xbf16, #tpu.memory_space<vmem>>, vector<128x128xbf16>
    %cst_94 = arith.constant dense<0.000000e+00> : vector<1x128xf32>
    %242 = tpu.matmul %240, %241, %cst_94 {dimension_numbers = #tpu.dot_dimension_numbers<[1], [0], [0], [1], [0, 0, 1, 1], [], []>} : vector<1x128xbf16>, vector<128x128xbf16>, vector<1x128xf32> -> vector<1x128xf32>
    %c0_95 = arith.constant 0 : index
    %c0_96 = arith.constant 0 : index
    %243 = vector.load %arg23[%c0_95, %c0_96] : memref<32x128xbf16, #tpu.memory_space<vmem>>, vector<32x128xbf16>
    %cst_97 = arith.constant dense<0.000000e+00> : vector<1x128xf32>
    %244 = tpu.matmul %227, %243, %cst_97 {dimension_numbers = #tpu.dot_dimension_numbers<[1], [0], [0], [1], [0, 0, 1, 1], [], []>} : vector<1x32xbf16>, vector<32x128xbf16>, vector<1x128xf32> -> vector<1x128xf32>
    %245 = arith.addf %242, %244 : vector<1x128xf32>
    %c0_98 = arith.constant 0 : index
    %c0_99 = arith.constant 0 : index
    %246 = vector.load %arg24[%c0_98, %c0_99] : memref<1x128xf32, #tpu.memory_space<vmem>>, vector<1x128xf32>
    %247 = arith.addf %245, %246 : vector<1x128xf32>
    %cst_100 = arith.constant 0.000000e+00 : f32
    %248 = vector.broadcast %cst_100 : f32 to vector<5x128xf32>
    %249 = tpu.concatenate %231, %239, %247, %248 in 0 : vector<1x128xf32>, vector<1x128xf32>, vector<1x128xf32>, vector<5x128xf32> -> vector<8x128xf32>
    %c0_101 = arith.constant 0 : index
    %c0_102 = arith.constant 0 : index
    %c0_103 = arith.constant 0 : index
    %250 = vector.load %arg25[%c0_101, %c0_102, %c0_103] : memref<1x8x128xf32, #tpu.memory_space<vmem>>, vector<1x8x128xf32>
    %251 = vector.shape_cast %250 : vector<1x8x128xf32> to vector<8x128xf32>
    %252 = vector.shape_cast %249 : vector<8x128xf32> to vector<1x8x128xf32>
    tpu.vector_store %arg25[%c0_101, %c0_102, %c0_103], %252 {strides = array<i32>} : memref<1x8x128xf32, #tpu.memory_space<vmem>>, vector<1x8x128xf32>,
    return
  }
  func.func @transform_0(%arg0: i32) -> (i32, i32, i32) {
    %c0_i32 = arith.constant 0 : i32
    %c0_i32_0 = arith.constant 0 : i32
    %c0_i32_1 = arith.constant 0 : i32
    return %arg0, %c0_i32, %c0_i32_0 : i32, i32, i32
  }
  func.func @transform_1(%arg0: i32) -> (i32, i32) {
    %c0_i32 = arith.constant 0 : i32
    %c0_i32_0 = arith.constant 0 : i32
    %c0_i32_1 = arith.constant 0 : i32
    return %c0_i32, %c0_i32_0 : i32, i32
  }
  func.func @transform_2(%arg0: i32) -> (i32, i32) {
    %c0_i32 = arith.constant 0 : i32
    %c0_i32_0 = arith.constant 0 : i32
    %c0_i32_1 = arith.constant 0 : i32
    return %c0_i32, %c0_i32_0 : i32, i32
  }
  func.func @transform_3(%arg0: i32) -> (i32, i32) {
    %c0_i32 = arith.constant 0 : i32
    %c0_i32_0 = arith.constant 0 : i32
    %c0_i32_1 = arith.constant 0 : i32
    return %c0_i32, %c0_i32_0 : i32, i32
  }
  func.func @transform_4(%arg0: i32) -> (i32, i32) {
    %c0_i32 = arith.constant 0 : i32
    %c0_i32_0 = arith.constant 0 : i32
    %c0_i32_1 = arith.constant 0 : i32
    return %c0_i32, %c0_i32_0 : i32, i32
  }
  func.func @transform_5(%arg0: i32) -> (i32, i32) {
    %c0_i32 = arith.constant 0 : i32
    %c0_i32_0 = arith.constant 0 : i32
    %c0_i32_1 = arith.constant 0 : i32
    return %c0_i32, %c0_i32_0 : i32, i32
  }
  func.func @transform_6(%arg0: i32) -> (i32, i32) {
    %c0_i32 = arith.constant 0 : i32
    %c0_i32_0 = arith.constant 0 : i32
    %c0_i32_1 = arith.constant 0 : i32
    return %c0_i32, %c0_i32_0 : i32, i32
  }
  func.func @transform_7(%arg0: i32) -> (i32, i32) {
    %c0_i32 = arith.constant 0 : i32
    %c0_i32_0 = arith.constant 0 : i32
    %c0_i32_1 = arith.constant 0 : i32
    return %c0_i32, %c0_i32_0 : i32, i32
  }
  func.func @transform_8(%arg0: i32) -> (i32, i32) {
    %c0_i32 = arith.constant 0 : i32
    %c0_i32_0 = arith.constant 0 : i32
    %c0_i32_1 = arith.constant 0 : i32
    return %c0_i32, %c0_i32_0 : i32, i32
  }
  func.func @transform_9(%arg0: i32) -> (i32, i32) {
    %c0_i32 = arith.constant 0 : i32
    %c0_i32_0 = arith.constant 0 : i32
    %c0_i32_1 = arith.constant 0 : i32
    return %c0_i32, %c0_i32_0 : i32, i32
  }
  func.func @transform_10(%arg0: i32) -> (i32, i32) {
    %c0_i32 = arith.constant 0 : i32
    %c0_i32_0 = arith.constant 0 : i32
    %c0_i32_1 = arith.constant 0 : i32
    return %c0_i32, %c0_i32_0 : i32, i32
  }
  func.func @transform_11(%arg0: i32) -> (i32, i32) {
    %c0_i32 = arith.constant 0 : i32
    %c0_i32_0 = arith.constant 0 : i32
    %c0_i32_1 = arith.constant 0 : i32
    return %c0_i32, %c0_i32_0 : i32, i32
  }
  func.func @transform_12(%arg0: i32) -> (i32, i32) {
    %c0_i32 = arith.constant 0 : i32
    %c0_i32_0 = arith.constant 0 : i32
    %c0_i32_1 = arith.constant 0 : i32
    return %c0_i32, %c0_i32_0 : i32, i32
  }
  func.func @transform_13(%arg0: i32) -> (i32, i32) {
    %c0_i32 = arith.constant 0 : i32
    %c0_i32_0 = arith.constant 0 : i32
    %c0_i32_1 = arith.constant 0 : i32
    return %c0_i32, %c0_i32_0 : i32, i32
  }
  func.func @transform_14(%arg0: i32) -> (i32, i32) {
    %c0_i32 = arith.constant 0 : i32
    %c0_i32_0 = arith.constant 0 : i32
    %c0_i32_1 = arith.constant 0 : i32
    return %c0_i32, %c0_i32_0 : i32, i32
  }
  func.func @transform_15(%arg0: i32) -> (i32, i32) {
    %c0_i32 = arith.constant 0 : i32
    %c0_i32_0 = arith.constant 0 : i32
    %c0_i32_1 = arith.constant 0 : i32
    return %c0_i32, %c0_i32_0 : i32, i32
  }
  func.func @transform_16(%arg0: i32) -> (i32, i32) {
    %c0_i32 = arith.constant 0 : i32
    %c0_i32_0 = arith.constant 0 : i32
    %c0_i32_1 = arith.constant 0 : i32
    return %c0_i32, %c0_i32_0 : i32, i32
  }
  func.func @transform_17(%arg0: i32) -> (i32, i32) {
    %c0_i32 = arith.constant 0 : i32
    %c0_i32_0 = arith.constant 0 : i32
    %c0_i32_1 = arith.constant 0 : i32
    return %c0_i32, %c0_i32_0 : i32, i32
  }
  func.func @transform_18(%arg0: i32) -> (i32, i32) {
    %c0_i32 = arith.constant 0 : i32
    %c0_i32_0 = arith.constant 0 : i32
    %c0_i32_1 = arith.constant 0 : i32
    return %c0_i32, %c0_i32_0 : i32, i32
  }
  func.func @transform_19(%arg0: i32) -> (i32, i32) {
    %c0_i32 = arith.constant 0 : i32
    %c0_i32_0 = arith.constant 0 : i32
    %c0_i32_1 = arith.constant 0 : i32
    return %c0_i32, %c0_i32_0 : i32, i32
  }
  func.func @transform_20(%arg0: i32) -> (i32, i32) {
    %c0_i32 = arith.constant 0 : i32
    %c0_i32_0 = arith.constant 0 : i32
    %c0_i32_1 = arith.constant 0 : i32
    return %c0_i32, %c0_i32_0 : i32, i32
  }
  func.func @transform_21(%arg0: i32) -> (i32, i32) {
    %c0_i32 = arith.constant 0 : i32
    %c0_i32_0 = arith.constant 0 : i32
    %c0_i32_1 = arith.constant 0 : i32
    return %c0_i32, %c0_i32_0 : i32, i32
  }
  func.func @transform_22(%arg0: i32) -> (i32, i32) {
    %c0_i32 = arith.constant 0 : i32
    %c0_i32_0 = arith.constant 0 : i32
    %c0_i32_1 = arith.constant 0 : i32
    return %c0_i32, %c0_i32_0 : i32, i32
  }
  func.func @transform_23(%arg0: i32) -> (i32, i32) {
    %c0_i32 = arith.constant 0 : i32
    %c0_i32_0 = arith.constant 0 : i32
    %c0_i32_1 = arith.constant 0 : i32
    return %c0_i32, %c0_i32_0 : i32, i32
  }
  func.func @transform_24(%arg0: i32) -> (i32, i32, i32) {
    %c0_i32 = arith.constant 0 : i32
    %c0_i32_0 = arith.constant 0 : i32
    %c0_i32_1 = arith.constant 0 : i32
    return %arg0, %c0_i32, %c0_i32_0 : i32, i32, i32
  }
}

</mosaic_0001>

<llo_original>
// kernel: trans_mehta_forward.1
$region0: #{trans_mehta_forward.1}
  #allocation0 [shape = 'u32[]', space=smem, size = 0x4, offset = 0x4, fixed_abs, tag = 'smem constant byte address 0x4 - core index']
  #allocation1 [shape = 'u32[144,128]{1,0:T(1,128)}', space=vmem, size = 0x12000, scoped, tag = 'internal scratch']
  %s0 = inlined_call_operand.vmem [shape: bf16[2,8,192], index: 0, kind: input, shape index: {}]
  %s1 = inlined_call_operand.vmem [shape: bf16[192,32], index: 1, kind: input, shape index: {}]
  %s2 = inlined_call_operand.vmem [shape: f32[1,32], index: 2, kind: input, shape index: {}]
  %s3 = inlined_call_operand.vmem [shape: f32[1,32], index: 3, kind: input, shape index: {}]
  %s4 = inlined_call_operand.vmem [shape: f32[1,32], index: 4, kind: input, shape index: {}]
  %s5 = inlined_call_operand.vmem [shape: f32[1,32], index: 5, kind: input, shape index: {}]
  %s6 = inlined_call_operand.vmem [shape: bf16[32,96], index: 6, kind: input, shape index: {}]
  %s7 = inlined_call_operand.vmem [shape: f32[1,96], index: 7, kind: input, shape index: {}]
  %s8 = inlined_call_operand.vmem [shape: bf16[32,32], index: 8, kind: input, shape index: {}]
  %s9 = inlined_call_operand.vmem [shape: f32[1,32], index: 9, kind: input, shape index: {}]
  %s10 = inlined_call_operand.vmem [shape: f32[1,32], index: 10, kind: input, shape index: {}]
  %s11 = inlined_call_operand.vmem [shape: f32[1,32], index: 11, kind: input, shape index: {}]
  %s12 = inlined_call_operand.vmem [shape: bf16[32,64], index: 12, kind: input, shape index: {}]
  %s13 = inlined_call_operand.vmem [shape: f32[1,64], index: 13, kind: input, shape index: {}]
  %s14 = inlined_call_operand.vmem [shape: bf16[64,32], index: 14, kind: input, shape index: {}]
  %s15 = inlined_call_operand.vmem [shape: f32[1,32], index: 15, kind: input, shape index: {}]
  %s16 = inlined_call_operand.vmem [shape: bf16[32,128], index: 16, kind: input, shape index: {}]
  %s17 = inlined_call_operand.vmem [shape: f32[1,128], index: 17, kind: input, shape index: {}]
  %s18 = inlined_call_operand.vmem [shape: bf16[128,128], index: 18, kind: input, shape index: {}]
  %s19 = inlined_call_operand.vmem [shape: bf16[32,128], index: 19, kind: input, shape index: {}]
  %s20 = inlined_call_operand.vmem [shape: f32[1,128], index: 20, kind: input, shape index: {}]
  %s21 = inlined_call_operand.vmem [shape: bf16[128,128], index: 21, kind: input, shape index: {}]
  %s22 = inlined_call_operand.vmem [shape: bf16[32,128], index: 22, kind: input, shape index: {}]
  %s23 = inlined_call_operand.vmem [shape: f32[1,128], index: 23, kind: input, shape index: {}]
  %s24 = inlined_call_operand.vmem [shape: f32[2,8,128], index: 24, kind: output, shape index: {}]
  %s25 = sld [smem:[#allocation0]]
  $region129: #{trans_mehta_forward.1} parent=0
    _
  %s27 = ssub.s32 1, %s25
  %s28 = scalar_select 0, %s27, %s25
  loop: start=0, step=1, limit=4
  $region2: #{trans_mehta_forward.1} parent=0 // loop_pre_header
    _
  $region3: #{trans_mehta_forward.1} parent=0 // loop_header
    %s30 = sphi 0, %s34
    %p31 = scmp.ge.s32.totalorder %s30, 4
    %s40 = sphi 0, %s42
    %s43 = sphi 0, %s40
    %s44 = sphi 0, %s43
    %s60 = sphi 0, %s44
    %s64 = sphi 0, %s64
    %s66 = sphi 0, %s64
    %s67 = sphi 0, %s66
    %s81 = sphi 0, %s67
    %s85 = sphi 0, %s85
    %s87 = sphi 0, %s85
    %s88 = sphi 0, %s87
    %s102 = sphi 0, %s88
    %s106 = sphi 0, %s106
    %s108 = sphi 0, %s106
    %s109 = sphi 0, %s108
    %s123 = sphi 0, %s109
    %s127 = sphi 0, %s127
    %s129 = sphi 0, %s127
    %s130 = sphi 0, %s129
    %s144 = sphi 0, %s130
    %s148 = sphi 0, %s148
    %s150 = sphi 0, %s148
    %s151 = sphi 0, %s150
    %s165 = sphi 0, %s151
    %s169 = sphi 0, %s169
    %s171 = sphi 0, %s169
    %s172 = sphi 0, %s171
    %s186 = sphi 0, %s172
    %s190 = sphi 0, %s190
    %s192 = sphi 0, %s190
    %s193 = sphi 0, %s192
    %s207 = sphi 0, %s193
    %s211 = sphi 0, %s211
    %s213 = sphi 0, %s211
    %s214 = sphi 0, %s213
    %s228 = sphi 0, %s214
    %s232 = sphi 0, %s232
    %s234 = sphi 0, %s232
    %s235 = sphi 0, %s234
    %s249 = sphi 0, %s235
    %s253 = sphi 0, %s253
    %s255 = sphi 0, %s253
    %s256 = sphi 0, %s255
    %s270 = sphi 0, %s256
    %s274 = sphi 0, %s274
    %s276 = sphi 0, %s274
    %s277 = sphi 0, %s276
    %s291 = sphi 0, %s277
    %s295 = sphi 0, %s295
    %s297 = sphi 0, %s295
    %s298 = sphi 0, %s297
    %s312 = sphi 0, %s298
    %s316 = sphi 0, %s316
    %s318 = sphi 0, %s316
    %s319 = sphi 0, %s318
    %s333 = sphi 0, %s319
    %s337 = sphi 0, %s337
    %s339 = sphi 0, %s337
    %s340 = sphi 0, %s339
    %s354 = sphi 0, %s340
    %s358 = sphi 0, %s358
    %s360 = sphi 0, %s358
    %s361 = sphi 0, %s360
    %s375 = sphi 0, %s361
    %s379 = sphi 0, %s379
    %s381 = sphi 0, %s379
    %s382 = sphi 0, %s381
    %s396 = sphi 0, %s382
    %s400 = sphi 0, %s400
    %s402 = sphi 0, %s400
    %s403 = sphi 0, %s402
    %s417 = sphi 0, %s403
    %s421 = sphi 0, %s421
    %s423 = sphi 0, %s421
    %s424 = sphi 0, %s423
    %s438 = sphi 0, %s424
    %s442 = sphi 0, %s442
    %s444 = sphi 0, %s442
    %s445 = sphi 0, %s444
    %s459 = sphi 0, %s445
    %s463 = sphi 0, %s463
    %s465 = sphi 0, %s463
    %s466 = sphi 0, %s465
    %s480 = sphi 0, %s466
    %s484 = sphi 0, %s484
    %s486 = sphi 0, %s484
    %s487 = sphi 0, %s486
    %s501 = sphi 0, %s487
    %s505 = sphi 0, %s505
    %s507 = sphi 0, %s505
    %s508 = sphi 0, %s507
    %s522 = sphi 0, %s508
    %s526 = sphi 0, %s526
    %s528 = sphi 0, %s526
    %s529 = sphi 0, %s528
    %s543 = sphi 0, %s529
    %s549 = sphi 0, %s551
    %s552 = sphi 0, %s549
    %s553 = sphi 0, %s552
    %s569 = sphi 0, %s553
  $region4: #{trans_mehta_forward.1} parent=0 // loop_header_branch
    %33 = sbr.rel (%p31) target = $region8
  $region5: #{trans_mehta_forward.1} parent=0 // loop_body
    %s35 = ssub.s32 %s30, 1
    %s36 = ssub.s32 %s30, 2
    %s37 = sadd.s32 %s30, 1
    %s38 = ssub.s32 %s30, %s37
    %p39 = scmp.eq.s32.totalorder %s38, 0
    %s41 = sadd.s32 %s40, 1
    %s42 = scalar_select %p39, %s40, %s41
    %p45 = pneg %p39
    %p46 = scmp.eq.s32.totalorder %s30, 1
    %p47 = por %p45, %p46
    %p48 = scmp.ne.s32.totalorder %s40, %s43
    %p49 = scmp.eq.s32.totalorder %s30, 0
    %p50 = por %p48, %p49
    %p51 = scmp.ne.s32.totalorder %s40, %s43
    %p52 = scmp.eq.s32.totalorder %s35, 1
    %p53 = por %p51, %p52
    %p54 = scmp.ne.s32.totalorder %s43, %s44
    %p55 = scmp.eq.s32.totalorder %s35, 0
    %p56 = por %p54, %p55
    %p57 = scmp.ne.s32.totalorder %s43, %s44
    %p58 = scmp.eq.s32.totalorder %s36, 1
    %p59 = por %p57, %p58
    %p61 = scmp.ne.s32.totalorder %s44, %s60
    %p62 = scmp.eq.s32.totalorder %s36, 0
    %p63 = por %p61, %p62
    %s65 = sadd.s32 %s64, 1
    %p68 = scmp.eq.s32.totalorder %s30, 1
    %p69 = scmp.ne.s32.totalorder %s64, %s66
    %p70 = scmp.eq.s32.totalorder %s30, 0
    %p71 = por %p69, %p70
    %p72 = scmp.ne.s32.totalorder %s64, %s66
    %p73 = scmp.eq.s32.totalorder %s35, 1
    %p74 = por %p72, %p73
    %p75 = scmp.ne.s32.totalorder %s66, %s67
    %p76 = scmp.eq.s32.totalorder %s35, 0
    %p77 = por %p75, %p76
    %p78 = scmp.ne.s32.totalorder %s66, %s67
    %p79 = scmp.eq.s32.totalorder %s36, 1
    %p80 = por %p78, %p79
    %p82 = scmp.ne.s32.totalorder %s67, %s81
    %p83 = scmp.eq.s32.totalorder %s36, 0
    %p84 = por %p82, %p83
    %s86 = sadd.s32 %s85, 1
    %p89 = scmp.eq.s32.totalorder %s30, 1
    %p90 = scmp.ne.s32.totalorder %s85, %s87
    %p91 = scmp.eq.s32.totalorder %s30, 0
    %p92 = por %p90, %p91
    %p93 = scmp.ne.s32.totalorder %s85, %s87
    %p94 = scmp.eq.s32.totalorder %s35, 1
    %p95 = por %p93, %p94
    %p96 = scmp.ne.s32.totalorder %s87, %s88
    %p97 = scmp.eq.s32.totalorder %s35, 0
    %p98 = por %p96, %p97
    %p99 = scmp.ne.s32.totalorder %s87, %s88
    %p100 = scmp.eq.s32.totalorder %s36, 1
    %p101 = por %p99, %p100
    %p103 = scmp.ne.s32.totalorder %s88, %s102
    %p104 = scmp.eq.s32.totalorder %s36, 0
    %p105 = por %p103, %p104
    %s107 = sadd.s32 %s106, 1
    %p110 = scmp.eq.s32.totalorder %s30, 1
    %p111 = scmp.ne.s32.totalorder %s106, %s108
    %p112 = scmp.eq.s32.totalorder %s30, 0
    %p113 = por %p111, %p112
    %p114 = scmp.ne.s32.totalorder %s106, %s108
    %p115 = scmp.eq.s32.totalorder %s35, 1
    %p116 = por %p114, %p115
    %p117 = scmp.ne.s32.totalorder %s108, %s109
    %p118 = scmp.eq.s32.totalorder %s35, 0
    %p119 = por %p117, %p118
    %p120 = scmp.ne.s32.totalorder %s108, %s109
    %p121 = scmp.eq.s32.totalorder %s36, 1
    %p122 = por %p120, %p121
    %p124 = scmp.ne.s32.totalorder %s109, %s123
    %p125 = scmp.eq.s32.totalorder %s36, 0
    %p126 = por %p124, %p125
    %s128 = sadd.s32 %s127, 1
    %p131 = scmp.eq.s32.totalorder %s30, 1
    %p132 = scmp.ne.s32.totalorder %s127, %s129
    %p133 = scmp.eq.s32.totalorder %s30, 0
    %p134 = por %p132, %p133
    %p135 = scmp.ne.s32.totalorder %s127, %s129
    %p136 = scmp.eq.s32.totalorder %s35, 1
    %p137 = por %p135, %p136
    %p138 = scmp.ne.s32.totalorder %s129, %s130
    %p139 = scmp.eq.s32.totalorder %s35, 0
    %p140 = por %p138, %p139
    %p141 = scmp.ne.s32.totalorder %s129, %s130
    %p142 = scmp.eq.s32.totalorder %s36, 1
    %p143 = por %p141, %p142
    %p145 = scmp.ne.s32.totalorder %s130, %s144
    %p146 = scmp.eq.s32.totalorder %s36, 0
    %p147 = por %p145, %p146
    %s149 = sadd.s32 %s148, 1
    %p152 = scmp.eq.s32.totalorder %s30, 1
    %p153 = scmp.ne.s32.totalorder %s148, %s150
    %p154 = scmp.eq.s32.totalorder %s30, 0
    %p155 = por %p153, %p154
    %p156 = scmp.ne.s32.totalorder %s148, %s150
    %p157 = scmp.eq.s32.totalorder %s35, 1
    %p158 = por %p156, %p157
    %p159 = scmp.ne.s32.totalorder %s150, %s151
    %p160 = scmp.eq.s32.totalorder %s35, 0
    %p161 = por %p159, %p160
    %p162 = scmp.ne.s32.totalorder %s150, %s151
    %p163 = scmp.eq.s32.totalorder %s36, 1
    %p164 = por %p162, %p163
    %p166 = scmp.ne.s32.totalorder %s151, %s165
    %p167 = scmp.eq.s32.totalorder %s36, 0
    %p168 = por %p166, %p167
    %s170 = sadd.s32 %s169, 1
    %p173 = scmp.eq.s32.totalorder %s30, 1
    %p174 = scmp.ne.s32.totalorder %s169, %s171
    %p175 = scmp.eq.s32.totalorder %s30, 0
    %p176 = por %p174, %p175
    %p177 = scmp.ne.s32.totalorder %s169, %s171
    %p178 = scmp.eq.s32.totalorder %s35, 1
    %p179 = por %p177, %p178
    %p180 = scmp.ne.s32.totalorder %s171, %s172
    %p181 = scmp.eq.s32.totalorder %s35, 0
    %p182 = por %p180, %p181
    %p183 = scmp.ne.s32.totalorder %s171, %s172
    %p184 = scmp.eq.s32.totalorder %s36, 1
    %p185 = por %p183, %p184
    %p187 = scmp.ne.s32.totalorder %s172, %s186
    %p188 = scmp.eq.s32.totalorder %s36, 0
    %p189 = por %p187, %p188
    %s191 = sadd.s32 %s190, 1
    %p194 = scmp.eq.s32.totalorder %s30, 1
    %p195 = scmp.ne.s32.totalorder %s190, %s192
    %p196 = scmp.eq.s32.totalorder %s30, 0
    %p197 = por %p195, %p196
    %p198 = scmp.ne.s32.totalorder %s190, %s192
    %p199 = scmp.eq.s32.totalorder %s35, 1
    %p200 = por %p198, %p199
    %p201 = scmp.ne.s32.totalorder %s192, %s193
    %p202 = scmp.eq.s32.totalorder %s35, 0
    %p203 = por %p201, %p202
    %p204 = scmp.ne.s32.totalorder %s192, %s193
    %p205 = scmp.eq.s32.totalorder %s36, 1
    %p206 = por %p204, %p205
    %p208 = scmp.ne.s32.totalorder %s193, %s207
    %p209 = scmp.eq.s32.totalorder %s36, 0
    %p210 = por %p208, %p209
    %s212 = sadd.s32 %s211, 1
    %p215 = scmp.eq.s32.totalorder %s30, 1
    %p216 = scmp.ne.s32.totalorder %s211, %s213
    %p217 = scmp.eq.s32.totalorder %s30, 0
    %p218 = por %p216, %p217
    %p219 = scmp.ne.s32.totalorder %s211, %s213
    %p220 = scmp.eq.s32.totalorder %s35, 1
    %p221 = por %p219, %p220
    %p222 = scmp.ne.s32.totalorder %s213, %s214
    %p223 = scmp.eq.s32.totalorder %s35, 0
    %p224 = por %p222, %p223
    %p225 = scmp.ne.s32.totalorder %s213, %s214
    %p226 = scmp.eq.s32.totalorder %s36, 1
    %p227 = por %p225, %p226
    %p229 = scmp.ne.s32.totalorder %s214, %s228
    %p230 = scmp.eq.s32.totalorder %s36, 0
    %p231 = por %p229, %p230
    %s233 = sadd.s32 %s232, 1
    %p236 = scmp.eq.s32.totalorder %s30, 1
    %p237 = scmp.ne.s32.totalorder %s232, %s234
    %p238 = scmp.eq.s32.totalorder %s30, 0
    %p239 = por %p237, %p238
    %p240 = scmp.ne.s32.totalorder %s232, %s234
    %p241 = scmp.eq.s32.totalorder %s35, 1
    %p242 = por %p240, %p241
    %p243 = scmp.ne.s32.totalorder %s234, %s235
    %p244 = scmp.eq.s32.totalorder %s35, 0
    %p245 = por %p243, %p244
    %p246 = scmp.ne.s32.totalorder %s234, %s235
    %p247 = scmp.eq.s32.totalorder %s36, 1
    %p248 = por %p246, %p247
    %p250 = scmp.ne.s32.totalorder %s235, %s249
    %p251 = scmp.eq.s32.totalorder %s36, 0
    %p252 = por %p250, %p251
    %s254 = sadd.s32 %s253, 1
    %p257 = scmp.eq.s32.totalorder %s30, 1
    %p258 = scmp.ne.s32.totalorder %s253, %s255
    %p259 = scmp.eq.s32.totalorder %s30, 0
    %p260 = por %p258, %p259
    %p261 = scmp.ne.s32.totalorder %s253, %s255
    %p262 = scmp.eq.s32.totalorder %s35, 1
    %p263 = por %p261, %p262
    %p264 = scmp.ne.s32.totalorder %s255, %s256
    %p265 = scmp.eq.s32.totalorder %s35, 0
    %p266 = por %p264, %p265
    %p267 = scmp.ne.s32.totalorder %s255, %s256
    %p268 = scmp.eq.s32.totalorder %s36, 1
    %p269 = por %p267, %p268
    %p271 = scmp.ne.s32.totalorder %s256, %s270
    %p272 = scmp.eq.s32.totalorder %s36, 0
    %p273 = por %p271, %p272
    %s275 = sadd.s32 %s274, 1
    %p278 = scmp.eq.s32.totalorder %s30, 1
    %p279 = scmp.ne.s32.totalorder %s274, %s276
    %p280 = scmp.eq.s32.totalorder %s30, 0
    %p281 = por %p279, %p280
    %p282 = scmp.ne.s32.totalorder %s274, %s276
    %p283 = scmp.eq.s32.totalorder %s35, 1
    %p284 = por %p282, %p283
    %p285 = scmp.ne.s32.totalorder %s276, %s277
    %p286 = scmp.eq.s32.totalorder %s35, 0
    %p287 = por %p285, %p286
    %p288 = scmp.ne.s32.totalorder %s276, %s277
    %p289 = scmp.eq.s32.totalorder %s36, 1
    %p290 = por %p288, %p289
    %p292 = scmp.ne.s32.totalorder %s277, %s291
    %p293 = scmp.eq.s32.totalorder %s36, 0
    %p294 = por %p292, %p293
    %s296 = sadd.s32 %s295, 1
    %p299 = scmp.eq.s32.totalorder %s30, 1
    %p300 = scmp.ne.s32.totalorder %s295, %s297
    %p301 = scmp.eq.s32.totalorder %s30, 0
    %p302 = por %p300, %p301
    %p303 = scmp.ne.s32.totalorder %s295, %s297
    %p304 = scmp.eq.s32.totalorder %s35, 1
    %p305 = por %p303, %p304
    %p306 = scmp.ne.s32.totalorder %s297, %s298
    %p307 = scmp.eq.s32.totalorder %s35, 0
    %p308 = por %p306, %p307
    %p309 = scmp.ne.s32.totalorder %s297, %s298
    %p310 = scmp.eq.s32.totalorder %s36, 1
    %p311 = por %p309, %p310
    %p313 = scmp.ne.s32.totalorder %s298, %s312
    %p314 = scmp.eq.s32.totalorder %s36, 0
    %p315 = por %p313, %p314
    %s317 = sadd.s32 %s316, 1
    %p320 = scmp.eq.s32.totalorder %s30, 1
    %p321 = scmp.ne.s32.totalorder %s316, %s318
    %p322 = scmp.eq.s32.totalorder %s30, 0
    %p323 = por %p321, %p322
    %p324 = scmp.ne.s32.totalorder %s316, %s318
    %p325 = scmp.eq.s32.totalorder %s35, 1
    %p326 = por %p324, %p325
    %p327 = scmp.ne.s32.totalorder %s318, %s319
    %p328 = scmp.eq.s32.totalorder %s35, 0
    %p329 = por %p327, %p328
    %p330 = scmp.ne.s32.totalorder %s318, %s319
    %p331 = scmp.eq.s32.totalorder %s36, 1
    %p332 = por %p330, %p331
    %p334 = scmp.ne.s32.totalorder %s319, %s333
    %p335 = scmp.eq.s32.totalorder %s36, 0
    %p336 = por %p334, %p335
    %s338 = sadd.s32 %s337, 1
    %p341 = scmp.eq.s32.totalorder %s30, 1
    %p342 = scmp.ne.s32.totalorder %s337, %s339
    %p343 = scmp.eq.s32.totalorder %s30, 0
    %p344 = por %p342, %p343
    %p345 = scmp.ne.s32.totalorder %s337, %s339
    %p346 = scmp.eq.s32.totalorder %s35, 1
    %p347 = por %p345, %p346
    %p348 = scmp.ne.s32.totalorder %s339, %s340
    %p349 = scmp.eq.s32.totalorder %s35, 0
    %p350 = por %p348, %p349
    %p351 = scmp.ne.s32.totalorder %s339, %s340
    %p352 = scmp.eq.s32.totalorder %s36, 1
    %p353 = por %p351, %p352
    %p355 = scmp.ne.s32.totalorder %s340, %s354
    %p356 = scmp.eq.s32.totalorder %s36, 0
    %p357 = por %p355, %p356
    %s359 = sadd.s32 %s358, 1
    %p362 = scmp.eq.s32.totalorder %s30, 1
    %p363 = scmp.ne.s32.totalorder %s358, %s360
    %p364 = scmp.eq.s32.totalorder %s30, 0
    %p365 = por %p363, %p364
    %p366 = scmp.ne.s32.totalorder %s358, %s360
    %p367 = scmp.eq.s32.totalorder %s35, 1
    %p368 = por %p366, %p367
    %p369 = scmp.ne.s32.totalorder %s360, %s361
    %p370 = scmp.eq.s32.totalorder %s35, 0
    %p371 = por %p369, %p370
    %p372 = scmp.ne.s32.totalorder %s360, %s361
    %p373 = scmp.eq.s32.totalorder %s36, 1
    %p374 = por %p372, %p373
    %p376 = scmp.ne.s32.totalorder %s361, %s375
    %p377 = scmp.eq.s32.totalorder %s36, 0
    %p378 = por %p376, %p377
    %s380 = sadd.s32 %s379, 1
    %p383 = scmp.eq.s32.totalorder %s30, 1
    %p384 = scmp.ne.s32.totalorder %s379, %s381
    %p385 = scmp.eq.s32.totalorder %s30, 0
    %p386 = por %p384, %p385
    %p387 = scmp.ne.s32.totalorder %s379, %s381
    %p388 = scmp.eq.s32.totalorder %s35, 1
    %p389 = por %p387, %p388
    %p390 = scmp.ne.s32.totalorder %s381, %s382
    %p391 = scmp.eq.s32.totalorder %s35, 0
    %p392 = por %p390, %p391
    %p393 = scmp.ne.s32.totalorder %s381, %s382
    %p394 = scmp.eq.s32.totalorder %s36, 1
    %p395 = por %p393, %p394
    %p397 = scmp.ne.s32.totalorder %s382, %s396
    %p398 = scmp.eq.s32.totalorder %s36, 0
    %p399 = por %p397, %p398
    %s401 = sadd.s32 %s400, 1
    %p404 = scmp.eq.s32.totalorder %s30, 1
    %p405 = scmp.ne.s32.totalorder %s400, %s402
    %p406 = scmp.eq.s32.totalorder %s30, 0
    %p407 = por %p405, %p406
    %p408 = scmp.ne.s32.totalorder %s400, %s402
    %p409 = scmp.eq.s32.totalorder %s35, 1
    %p410 = por %p408, %p409
    %p411 = scmp.ne.s32.totalorder %s402, %s403
    %p412 = scmp.eq.s32.totalorder %s35, 0
    %p413 = por %p411, %p412
    %p414 = scmp.ne.s32.totalorder %s402, %s403
    %p415 = scmp.eq.s32.totalorder %s36, 1
    %p416 = por %p414, %p415
    %p418 = scmp.ne.s32.totalorder %s403, %s417
    %p419 = scmp.eq.s32.totalorder %s36, 0
    %p420 = por %p418, %p419
    %s422 = sadd.s32 %s421, 1
    %p425 = scmp.eq.s32.totalorder %s30, 1
    %p426 = scmp.ne.s32.totalorder %s421, %s423
    %p427 = scmp.eq.s32.totalorder %s30, 0
    %p428 = por %p426, %p427
    %p429 = scmp.ne.s32.totalorder %s421, %s423
    %p430 = scmp.eq.s32.totalorder %s35, 1
    %p431 = por %p429, %p430
    %p432 = scmp.ne.s32.totalorder %s423, %s424
    %p433 = scmp.eq.s32.totalorder %s35, 0
    %p434 = por %p432, %p433
    %p435 = scmp.ne.s32.totalorder %s423, %s424
    %p436 = scmp.eq.s32.totalorder %s36, 1
    %p437 = por %p435, %p436
    %p439 = scmp.ne.s32.totalorder %s424, %s438
    %p440 = scmp.eq.s32.totalorder %s36, 0
    %p441 = por %p439, %p440
    %s443 = sadd.s32 %s442, 1
    %p446 = scmp.eq.s32.totalorder %s30, 1
    %p447 = scmp.ne.s32.totalorder %s442, %s444
    %p448 = scmp.eq.s32.totalorder %s30, 0
    %p449 = por %p447, %p448
    %p450 = scmp.ne.s32.totalorder %s442, %s444
    %p451 = scmp.eq.s32.totalorder %s35, 1
    %p452 = por %p450, %p451
    %p453 = scmp.ne.s32.totalorder %s444, %s445
    %p454 = scmp.eq.s32.totalorder %s35, 0
    %p455 = por %p453, %p454
    %p456 = scmp.ne.s32.totalorder %s444, %s445
    %p457 = scmp.eq.s32.totalorder %s36, 1
    %p458 = por %p456, %p457
    %p460 = scmp.ne.s32.totalorder %s445, %s459
    %p461 = scmp.eq.s32.totalorder %s36, 0
    %p462 = por %p460, %p461
    %s464 = sadd.s32 %s463, 1
    %p467 = scmp.eq.s32.totalorder %s30, 1
    %p468 = scmp.ne.s32.totalorder %s463, %s465
    %p469 = scmp.eq.s32.totalorder %s30, 0
    %p470 = por %p468, %p469
    %p471 = scmp.ne.s32.totalorder %s463, %s465
    %p472 = scmp.eq.s32.totalorder %s35, 1
    %p473 = por %p471, %p472
    %p474 = scmp.ne.s32.totalorder %s465, %s466
    %p475 = scmp.eq.s32.totalorder %s35, 0
    %p476 = por %p474, %p475
    %p477 = scmp.ne.s32.totalorder %s465, %s466
    %p478 = scmp.eq.s32.totalorder %s36, 1
    %p479 = por %p477, %p478
    %p481 = scmp.ne.s32.totalorder %s466, %s480
    %p482 = scmp.eq.s32.totalorder %s36, 0
    %p483 = por %p481, %p482
    %s485 = sadd.s32 %s484, 1
    %p488 = scmp.eq.s32.totalorder %s30, 1
    %p489 = scmp.ne.s32.totalorder %s484, %s486
    %p490 = scmp.eq.s32.totalorder %s30, 0
    %p491 = por %p489, %p490
    %p492 = scmp.ne.s32.totalorder %s484, %s486
    %p493 = scmp.eq.s32.totalorder %s35, 1
    %p494 = por %p492, %p493
    %p495 = scmp.ne.s32.totalorder %s486, %s487
    %p496 = scmp.eq.s32.totalorder %s35, 0
    %p497 = por %p495, %p496
    %p498 = scmp.ne.s32.totalorder %s486, %s487
    %p499 = scmp.eq.s32.totalorder %s36, 1
    %p500 = por %p498, %p499
    %p502 = scmp.ne.s32.totalorder %s487, %s501
    %p503 = scmp.eq.s32.totalorder %s36, 0
    %p504 = por %p502, %p503
    %s506 = sadd.s32 %s505, 1
    %p509 = scmp.eq.s32.totalorder %s30, 1
    %p510 = scmp.ne.s32.totalorder %s505, %s507
    %p511 = scmp.eq.s32.totalorder %s30, 0
    %p512 = por %p510, %p511
    %p513 = scmp.ne.s32.totalorder %s505, %s507
    %p514 = scmp.eq.s32.totalorder %s35, 1
    %p515 = por %p513, %p514
    %p516 = scmp.ne.s32.totalorder %s507, %s508
    %p517 = scmp.eq.s32.totalorder %s35, 0
    %p518 = por %p516, %p517
    %p519 = scmp.ne.s32.totalorder %s507, %s508
    %p520 = scmp.eq.s32.totalorder %s36, 1
    %p521 = por %p519, %p520
    %p523 = scmp.ne.s32.totalorder %s508, %s522
    %p524 = scmp.eq.s32.totalorder %s36, 0
    %p525 = por %p523, %p524
    %s527 = sadd.s32 %s526, 1
    %p530 = scmp.eq.s32.totalorder %s30, 1
    %p531 = scmp.ne.s32.totalorder %s526, %s528
    %p532 = scmp.eq.s32.totalorder %s30, 0
    %p533 = por %p531, %p532
    %p534 = scmp.ne.s32.totalorder %s526, %s528
    %p535 = scmp.eq.s32.totalorder %s35, 1
    %p536 = por %p534, %p535
    %p537 = scmp.ne.s32.totalorder %s528, %s529
    %p538 = scmp.eq.s32.totalorder %s35, 0
    %p539 = por %p537, %p538
    %p540 = scmp.ne.s32.totalorder %s528, %s529
    %p541 = scmp.eq.s32.totalorder %s36, 1
    %p542 = por %p540, %p541
    %p544 = scmp.ne.s32.totalorder %s529, %s543
    %p545 = scmp.eq.s32.totalorder %s36, 0
    %p546 = por %p544, %p545
    %s547 = ssub.s32 %s30, %s37
    %p548 = scmp.eq.s32.totalorder %s547, 0
    %s550 = sadd.s32 %s549, 1
    %s551 = scalar_select %p548, %s549, %s550
    %p554 = pneg %p548
    %p555 = scmp.eq.s32.totalorder %s30, 1
    %p556 = por %p554, %p555
    %p557 = scmp.ne.s32.totalorder %s549, %s552
    %p558 = scmp.eq.s32.totalorder %s30, 0
    %p559 = por %p557, %p558
    %p560 = scmp.ne.s32.totalorder %s549, %s552
    %p561 = scmp.eq.s32.totalorder %s35, 1
    %p562 = por %p560, %p561
    %p563 = scmp.ne.s32.totalorder %s552, %s553
    %p564 = scmp.eq.s32.totalorder %s35, 0
    %p565 = por %p563, %p564
    %p566 = scmp.ne.s32.totalorder %s552, %s553
    %p567 = scmp.eq.s32.totalorder %s36, 1
    %p568 = por %p566, %p567
    %p570 = scmp.ne.s32.totalorder %s553, %s569
    %p571 = scmp.eq.s32.totalorder %s36, 0
    %p572 = por %p570, %p571
    %p573 = scmp.le.s32.totalorder 1, %s30
    %p574 = scmp.lt.s32.totalorder %s30, 3
    %p575 = pnand %p573, %p574
    %p576 = pneg %p575
    // Predicated region
    $region9: #{trans_mehta_forward.1} parent=5 // pred_check
      _
    $region10: #{trans_mehta_forward.1} parent=5 // pred_check_branch
      %578 = sbr.rel (%p575) target = $region12
    $region11: #{trans_mehta_forward.1} parent=5 // pred_region
      %s579 = ssub.s32 %s30, 1
      // Predicated region
      $region13: #{trans_mehta_forward.1} parent=11 // pred_check
        %p580 = pneg %p77
      $region14: #{trans_mehta_forward.1} parent=11 // pred_check_branch
        %582 = sbr.rel (%p580) target = $region16
      $region15: #{trans_mehta_forward.1} parent=11 // pred_region
        _
      $region16: #{trans_mehta_forward.1} parent=11 // pred_fallthru
        _
      // Predicated region
      $region17: #{trans_mehta_forward.1} parent=11 // pred_check
        %p583 = pneg %p98
      $region18: #{trans_mehta_forward.1} parent=11 // pred_check_branch
        %585 = sbr.rel (%p583) target = $region20
      $region19: #{trans_mehta_forward.1} parent=11 // pred_region
        _
      $region20: #{trans_mehta_forward.1} parent=11 // pred_fallthru
        _
      // Predicated region
      $region21: #{trans_mehta_forward.1} parent=11 // pred_check
        %p586 = pneg %p119
      $region22: #{trans_mehta_forward.1} parent=11 // pred_check_branch
        %588 = sbr.rel (%p586) target = $region24
      $region23: #{trans_mehta_forward.1} parent=11 // pred_region
        _
      $region24: #{trans_mehta_forward.1} parent=11 // pred_fallthru
        _
      // Predicated region
      $region25: #{trans_mehta_forward.1} parent=11 // pred_check
        %p589 = pneg %p140
      $region26: #{trans_mehta_forward.1} parent=11 // pred_check_branch
        %591 = sbr.rel (%p589) target = $region28
      $region27: #{trans_mehta_forward.1} parent=11 // pred_region
        _
      $region28: #{trans_mehta_forward.1} parent=11 // pred_fallthru
        _
      // Predicated region
      $region29: #{trans_mehta_forward.1} parent=11 // pred_check
        %p592 = pneg %p161
      $region30: #{trans_mehta_forward.1} parent=11 // pred_check_branch
        %594 = sbr.rel (%p592) target = $region32
      $region31: #{trans_mehta_forward.1} parent=11 // pred_region
        _
      $region32: #{trans_mehta_forward.1} parent=11 // pred_fallthru
        _
      // Predicated region
      $region33: #{trans_mehta_forward.1} parent=11 // pred_check
        %p595 = pneg %p182
      $region34: #{trans_mehta_forward.1} parent=11 // pred_check_branch
        %597 = sbr.rel (%p595) target = $region36
      $region35: #{trans_mehta_forward.1} parent=11 // pred_region
        _
      $region36: #{trans_mehta_forward.1} parent=11 // pred_fallthru
        _
      // Predicated region
      $region37: #{trans_mehta_forward.1} parent=11 // pred_check
        %p598 = pneg %p203
      $region38: #{trans_mehta_forward.1} parent=11 // pred_check_branch
        %600 = sbr.rel (%p598) target = $region40
      $region39: #{trans_mehta_forward.1} parent=11 // pred_region
        _
      $region40: #{trans_mehta_forward.1} parent=11 // pred_fallthru
        _
      // Predicated region
      $region41: #{trans_mehta_forward.1} parent=11 // pred_check
        %p601 = pneg %p224
      $region42: #{trans_mehta_forward.1} parent=11 // pred_check_branch
        %603 = sbr.rel (%p601) target = $region44
      $region43: #{trans_mehta_forward.1} parent=11 // pred_region
        _
      $region44: #{trans_mehta_forward.1} parent=11 // pred_fallthru
        _
      // Predicated region
      $region45: #{trans_mehta_forward.1} parent=11 // pred_check
        %p604 = pneg %p245
      $region46: #{trans_mehta_forward.1} parent=11 // pred_check_branch
        %606 = sbr.rel (%p604) target = $region48
      $region47: #{trans_mehta_forward.1} parent=11 // pred_region
        _
      $region48: #{trans_mehta_forward.1} parent=11 // pred_fallthru
        _
      // Predicated region
      $region49: #{trans_mehta_forward.1} parent=11 // pred_check
        %p607 = pneg %p266
      $region50: #{trans_mehta_forward.1} parent=11 // pred_check_branch
        %609 = sbr.rel (%p607) target = $region52
      $region51: #{trans_mehta_forward.1} parent=11 // pred_region
        _
      $region52: #{trans_mehta_forward.1} parent=11 // pred_fallthru
        _
      // Predicated region
      $region53: #{trans_mehta_forward.1} parent=11 // pred_check
        %p610 = pneg %p287
      $region54: #{trans_mehta_forward.1} parent=11 // pred_check_branch
        %612 = sbr.rel (%p610) target = $region56
      $region55: #{trans_mehta_forward.1} parent=11 // pred_region
        _
      $region56: #{trans_mehta_forward.1} parent=11 // pred_fallthru
        _
      // Predicated region
      $region57: #{trans_mehta_forward.1} parent=11 // pred_check
        %p613 = pneg %p308
      $region58: #{trans_mehta_forward.1} parent=11 // pred_check_branch
        %615 = sbr.rel (%p613) target = $region60
      $region59: #{trans_mehta_forward.1} parent=11 // pred_region
        _
      $region60: #{trans_mehta_forward.1} parent=11 // pred_fallthru
        _
      // Predicated region
      $region61: #{trans_mehta_forward.1} parent=11 // pred_check
        %p616 = pneg %p329
      $region62: #{trans_mehta_forward.1} parent=11 // pred_check_branch
        %618 = sbr.rel (%p616) target = $region64
      $region63: #{trans_mehta_forward.1} parent=11 // pred_region
        _
      $region64: #{trans_mehta_forward.1} parent=11 // pred_fallthru
        _
      // Predicated region
      $region65: #{trans_mehta_forward.1} parent=11 // pred_check
        %p619 = pneg %p350
      $region66: #{trans_mehta_forward.1} parent=11 // pred_check_branch
        %621 = sbr.rel (%p619) target = $region68
      $region67: #{trans_mehta_forward.1} parent=11 // pred_region
        _
      $region68: #{trans_mehta_forward.1} parent=11 // pred_fallthru
        _
      // Predicated region
      $region69: #{trans_mehta_forward.1} parent=11 // pred_check
        %p622 = pneg %p371
      $region70: #{trans_mehta_forward.1} parent=11 // pred_check_branch
        %624 = sbr.rel (%p622) target = $region72
      $region71: #{trans_mehta_forward.1} parent=11 // pred_region
        _
      $region72: #{trans_mehta_forward.1} parent=11 // pred_fallthru
        _
      // Predicated region
      $region73: #{trans_mehta_forward.1} parent=11 // pred_check
        %p625 = pneg %p392
      $region74: #{trans_mehta_forward.1} parent=11 // pred_check_branch
        %627 = sbr.rel (%p625) target = $region76
      $region75: #{trans_mehta_forward.1} parent=11 // pred_region
        _
      $region76: #{trans_mehta_forward.1} parent=11 // pred_fallthru
        _
      // Predicated region
      $region77: #{trans_mehta_forward.1} parent=11 // pred_check
        %p628 = pneg %p413
      $region78: #{trans_mehta_forward.1} parent=11 // pred_check_branch
        %630 = sbr.rel (%p628) target = $region80
      $region79: #{trans_mehta_forward.1} parent=11 // pred_region
        _
      $region80: #{trans_mehta_forward.1} parent=11 // pred_fallthru
        _
      // Predicated region
      $region81: #{trans_mehta_forward.1} parent=11 // pred_check
        %p631 = pneg %p434
      $region82: #{trans_mehta_forward.1} parent=11 // pred_check_branch
        %633 = sbr.rel (%p631) target = $region84
      $region83: #{trans_mehta_forward.1} parent=11 // pred_region
        _
      $region84: #{trans_mehta_forward.1} parent=11 // pred_fallthru
        _
      // Predicated region
      $region85: #{trans_mehta_forward.1} parent=11 // pred_check
        %p634 = pneg %p455
      $region86: #{trans_mehta_forward.1} parent=11 // pred_check_branch
        %636 = sbr.rel (%p634) target = $region88
      $region87: #{trans_mehta_forward.1} parent=11 // pred_region
        _
      $region88: #{trans_mehta_forward.1} parent=11 // pred_fallthru
        _
      // Predicated region
      $region89: #{trans_mehta_forward.1} parent=11 // pred_check
        %p637 = pneg %p476
      $region90: #{trans_mehta_forward.1} parent=11 // pred_check_branch
        %639 = sbr.rel (%p637) target = $region92
      $region91: #{trans_mehta_forward.1} parent=11 // pred_region
        _
      $region92: #{trans_mehta_forward.1} parent=11 // pred_fallthru
        _
      // Predicated region
      $region93: #{trans_mehta_forward.1} parent=11 // pred_check
        %p640 = pneg %p497
      $region94: #{trans_mehta_forward.1} parent=11 // pred_check_branch
        %642 = sbr.rel (%p640) target = $region96
      $region95: #{trans_mehta_forward.1} parent=11 // pred_region
        _
      $region96: #{trans_mehta_forward.1} parent=11 // pred_fallthru
        _
      // Predicated region
      $region97: #{trans_mehta_forward.1} parent=11 // pred_check
        %p643 = pneg %p518
      $region98: #{trans_mehta_forward.1} parent=11 // pred_check_branch
        %645 = sbr.rel (%p643) target = $region100
      $region99: #{trans_mehta_forward.1} parent=11 // pred_region
        _
      $region100: #{trans_mehta_forward.1} parent=11 // pred_fallthru
        _
      // Predicated region
      $region101: #{trans_mehta_forward.1} parent=11 // pred_check
        %p646 = pneg %p539
      $region102: #{trans_mehta_forward.1} parent=11 // pred_check_branch
        %648 = sbr.rel (%p646) target = $region104
      $region103: #{trans_mehta_forward.1} parent=11 // pred_region
        _
      $region104: #{trans_mehta_forward.1} parent=11 // pred_fallthru
        _
    $region12: #{trans_mehta_forward.1} parent=5 // pred_fallthru
      _
    %p649 = scmp.lt.s32.totalorder %s30, 2
    // Predicated region
    $region105: #{trans_mehta_forward.1} parent=5 // pred_check
      %p650 = pneg %p649
    $region106: #{trans_mehta_forward.1} parent=5 // pred_check_branch
      %652 = sbr.rel (%p650) target = $region108
    $region107: #{trans_mehta_forward.1} parent=5 // pred_region
      // Predicated region
      $region109: #{trans_mehta_forward.1} parent=107 // pred_check
        %p653 = pneg %p50
      $region110: #{trans_mehta_forward.1} parent=107 // pred_check_branch
        %655 = sbr.rel (%p653) target = $region112
      $region111: #{trans_mehta_forward.1} parent=107 // pred_region
        %p656 = scmp.lt.s32.totalorder %s30, 1
        %s657 = scalar_select %p656, %s30, 1
        %s658 = smul.addr %s657, 2
        %s659 = smul.addr %s658, 4
        %s660 = scalar_lea.vmem %s0, %s659
      $region112: #{trans_mehta_forward.1} parent=107 // pred_fallthru
        _
    $region108: #{trans_mehta_forward.1} parent=5 // pred_fallthru
      _
    %p661 = scmp.le.s32.totalorder 1, %s30
    %p662 = scmp.lt.s32.totalorder %s30, 3
    %p663 = pnand %p661, %p662
    %p664 = pneg %p663
    // Predicated region
    $region113: #{trans_mehta_forward.1} parent=5 // pred_check
      _
    $region114: #{trans_mehta_forward.1} parent=5 // pred_check_branch
      %666 = sbr.rel (%p663) target = $region116
    $region115: #{trans_mehta_forward.1} parent=5 // pred_region
      %s667 = ssub.s32 %s30, 1
      %p668 = scmp.lt.s32.totalorder %s35, 1
      %s669 = scalar_select %p668, %s35, 1
      %s670 = smul.addr %s669, 2
      %s671 = smul.addr %s670, 4
      %s672 = scalar_lea.vmem %s0, %s671
      %p673 = pneg %p56
      %p674 = pneg %p53
      %p675 = pneg %p77
      %p676 = pneg %p74
      %p677 = pneg %p98
      %p678 = pneg %p95
      %p679 = pneg %p119
      %p680 = pneg %p116
      %p681 = pneg %p140
      %p682 = pneg %p137
      %p683 = pneg %p161
      %p684 = pneg %p158
      %p685 = pneg %p182
      %p686 = pneg %p179
      %p687 = pneg %p203
      %p688 = pneg %p200
      %p689 = pneg %p224
      %p690 = pneg %p221
      %p691 = pneg %p245
      %p692 = pneg %p242
      %p693 = pneg %p266
      %p694 = pneg %p263
      %p695 = pneg %p287
      %p696 = pneg %p284
      %p697 = pneg %p308
      %p698 = pneg %p305
      %p699 = pneg %p329
      %p700 = pneg %p326
      %p701 = pneg %p350
      %p702 = pneg %p347
      %p703 = pneg %p371
      %p704 = pneg %p368
      %p705 = pneg %p392
      %p706 = pneg %p389
      %p707 = pneg %p413
      %p708 = pneg %p410
      %p709 = pneg %p434
      %p710 = pneg %p431
      %p711 = pneg %p455
      %p712 = pneg %p452
      %p713 = pneg %p476
      %p714 = pneg %p473
      %p715 = pneg %p497
      %p716 = pneg %p494
      %p717 = pneg %p518
      %p718 = pneg %p515
      %p719 = pneg %p539
      %p720 = pneg %p536
      %p721 = pneg %p565
      %p722 = pneg %p562
      %p723 = scmp.lt.s32.totalorder %s35, 1
      %s724 = scalar_select %p723, %s35, 1
      %s725 = smul.addr %s724, 8
      %s726 = scalar_lea.vmem %s24, %s725
      %p727 = scmp.lt.s32.totalorder %s35, 1
      %s728 = scalar_select %p727, %s35, 1
      %s729 = smul.addr %s728, 2
      %s730 = smul.addr %s729, 4
      %s731 = scalar_lea.vmem %s0, %s730
      %p732 = scmp.lt.s32.totalorder %s35, 1
      %s733 = scalar_select %p732, %s35, 1
      %s734 = smul.addr %s733, 8
      %s735 = scalar_lea.vmem %s24, %s734
      %v737 = vld [vmem:[%s731] sm:$0xff]
      %v738 = vld [vmem:[%s1] sm:$0xf]
      %v739 = vld [vmem:[%s1 + $0x4] sm:$0xf]
      %v740 = vld [vmem:[%s1 + $0x8] sm:$0xf]
      %v741 = vld [vmem:[%s1 + $0xc] sm:$0xf]
      %v742 = vld [vmem:[%s1 + $0x10] sm:$0xf]
      %v743 = vld [vmem:[%s1 + $0x14] sm:$0xf]
      %v744 = vld [vmem:[%s1 + $0x18] sm:$0xf]
      %v745 = vld [vmem:[%s1 + $0x1c] sm:$0xf]
      %v746 = vld [vmem:[%s1 + $0x20] sm:$0xf]
      %v747 = vld [vmem:[%s1 + $0x24] sm:$0xf]
      %v748 = vld [vmem:[%s1 + $0x28] sm:$0xf]
      %v749 = vld [vmem:[%s1 + $0x2c] sm:$0xf]
      %v750 = vld [vmem:[%s1 + $0x30] sm:$0xf]
      %v751 = vld [vmem:[%s1 + $0x34] sm:$0xf]
      %v752 = vld [vmem:[%s1 + $0x38] sm:$0xf]
      %v753 = vld [vmem:[%s1 + $0x3c] sm:$0xf]
      %v754 = vld [vmem:[%s1 + $0x40] sm:$0xf]
      %v755 = vld [vmem:[%s1 + $0x44] sm:$0xf]
      %v756 = vld [vmem:[%s1 + $0x48] sm:$0xf]
      %v757 = vld [vmem:[%s1 + $0x4c] sm:$0xf]
      %v758 = vld [vmem:[%s1 + $0x50] sm:$0xf]
      %v759 = vld [vmem:[%s1 + $0x54] sm:$0xf]
      %v760 = vld [vmem:[%s1 + $0x58] sm:$0xf]
      %v761 = vld [vmem:[%s1 + $0x5c] sm:$0xf]
      %v762 = vld [vmem:[%s2] sm:$0x1]
      %v764 = vlaneseq
      %v765 = vshrl.u32 %v764, 7
      %v766 = vsub.s32 0, %v765
      %v767 = vrot.slane %v762, %v766
      %v770 = vunpack.c.l.b16 %v737
      %v771 = vunpack.c.h.b16 %v737
      %v772 = vpack.c.b16 %v770, %v770
      %v773 = vpack.c.b16 %v771, %v771
      %v799 = vunpack.c.l.b16 %v738
      %v800 = vunpack.c.l.b16 %v739
      %v801 = vunpack.c.l.b16 %v740
      %v802 = vunpack.c.l.b16 %v741
      %v803 = vunpack.c.l.b16 %v742
      %v804 = vunpack.c.l.b16 %v743
      %v805 = vunpack.c.l.b16 %v744
      %v806 = vunpack.c.l.b16 %v745
      %v807 = vunpack.c.l.b16 %v746
      %v808 = vunpack.c.l.b16 %v747
      %v809 = vunpack.c.l.b16 %v748
      %v810 = vunpack.c.l.b16 %v749
      %v811 = vunpack.c.l.b16 %v750
      %v812 = vunpack.c.l.b16 %v751
      %v813 = vunpack.c.l.b16 %v752
      %v814 = vunpack.c.l.b16 %v753
      %v815 = vunpack.c.l.b16 %v754
      %v816 = vunpack.c.l.b16 %v755
      %v817 = vunpack.c.l.b16 %v756
      %v818 = vunpack.c.l.b16 %v757
      %v819 = vunpack.c.l.b16 %v758
      %v820 = vunpack.c.l.b16 %v759
      %v821 = vunpack.c.l.b16 %v760
      %v822 = vunpack.c.l.b16 %v761
      %v823 = vpack.c.b16 %v800, %v799
      %v824 = vpack.c.b16 %v802, %v801
      %v825 = vpack.c.b16 %v804, %v803
      %v826 = vpack.c.b16 %v806, %v805
      %v827 = vpack.c.b16 %v808, %v807
      %v828 = vpack.c.b16 %v810, %v809
      %v829 = vpack.c.b16 %v812, %v811
      %v830 = vpack.c.b16 %v814, %v813
      %v831 = vpack.c.b16 %v816, %v815
      %v832 = vpack.c.b16 %v818, %v817
      %v833 = vpack.c.b16 %v820, %v819
      %v834 = vpack.c.b16 %v822, %v821
      %vm847 = vcmask 523264
      %v849 = vsel %vm847, %v773, 0
      %851 = vmatprep.subr.bf16.mxu0 0
      %852 = vmatpush1.bf16.msra.mxu0 %v823
      %853 = vmatprep.subr.bf16.mxu0 0
      %854 = vmatpush1.bf16.msra.mxu0 %v824
      %855 = vmatprep.subr.bf16.mxu0 0
      %856 = vmatpush1.bf16.msra.mxu0 %v825
      %857 = vmatprep.subr.bf16.mxu0 0
      %858 = vmatpush1.bf16.msra.mxu0 %v826
      %859 = vmatprep.subr.bf16.mxu0 0
      %860 = vmatpush1.bf16.msra.mxu0 %v827
      %861 = vmatprep.subr.bf16.mxu0 0
      %862 = vmatpush1.bf16.msra.mxu0 %v828
      %863 = vmatprep.subr.bf16.mxu0 0
      %864 = vmatpush1.bf16.msra.mxu0 %v829
      %865 = vmatprep.subr.bf16.mxu0 0
      %866 = vmatpush1.bf16.msra.mxu0 %v830
      %867 = vmatprep.subr.bf16.mxu0 0
      %868 = vmatpush1.bf16.msra.mxu0 %v831
      %869 = vmatprep.subr.bf16.mxu0 0
      %870 = vmatpush1.bf16.msra.mxu0 %v832
      %871 = vmatprep.subr.bf16.mxu0 0
      %872 = vmatpush1.bf16.msra.mxu0 %v833
      %873 = vmatprep.subr.bf16.mxu0 0
      %874 = vmatpush1.bf16.msra.mxu0 %v834
      %875 = vmatprep.subr.bf16.mxu0 0
      %876 = vmatpush1.bf16.msra.mxu0 0
      %877 = vmatprep.subr.bf16.mxu0 0
      %878 = vmatpush1.bf16.msra.mxu0 0
      %879 = vmatprep.subr.bf16.mxu0 0
      %880 = vmatpush1.bf16.msra.mxu0 0
      %881 = vmatprep.subr.bf16.mxu0 0
      %882 = vmatpush1.bf16.msra.mxu0 0
      %883 = vmatprep.mubr.bf16.mxu0 %v849
      %884 = vmatmul.mubr.bf16.gmra.mrb[0].mxu0 %v772
      %v885 = vpop.f32.mrb[0].mxu0
      %v886 = vadd.f32 %v767, %v885
      %v887 = vpop.f32.mrb[0].mxu0
      %v888 = vpop.f32.mrb[0].mxu0
      %v889 = vpop.f32.mrb[0].mxu0
      %890 = vdwg.mxu0
      %v891 = vlaneseq
      %v892 = vshrl.u32 %v891, 7
      %vm893 = vcmp.eq.s32.totalorder %v892, 4
      %v894 = vld [vmem:[%s3] sm:$0x1]
      %v896 = vlaneseq
      %v897 = vshrl.u32 %v896, 7
      %v898 = vsub.s32 0, %v897
      %v899 = vrot.slane %v894, %v898
      %v901 = vsel %vm893, %v899, %v886
      %v902 = vlaneseq
      %v903 = vand.u32 %v902, 127
      %vm904 = vcmp.lt.s32.totalorder %v903, 5
      %v905 = vsel %vm904, 0.0, -1e+30
      %v906 = vld [vmem:[%s4] sm:$0x1]
      %v907 = vld [vmem:[%s5] sm:$0x1]
      %vm908 = vcmask 261120
      %v909 = vsel %vm908, %v901, 0.0
      %910 = vadd.xlane.f32.xlu0 %v909
      %v911 = vpop.xlane.xlu0 %910
      %v912 = vrcp.pop 32.0
      %v913 = vmul.f32 %v911, %v912
      %v914 = vsub.f32 %v901, %v913
      %v915 = vmul.f32 %v914, %v914
      %v916 = vsel %vm908, %v915, 0.0
      %917 = vadd.xlane.f32.xlu0 %v916
      %v918 = vpop.xlane.xlu0 %917
      %v919 = vmul.f32 %v918, %v912
      %v920 = vadd.f32 %v919, 1e-05
      %v921 = vrsqrt.pop %v920
      %v922 = vmul.f32 %v914, %v921
      %v924 = vlaneseq
      %v925 = vshrl.u32 %v924, 7
      %v926 = vsub.s32 0, %v925
      %v927 = vrot.slane %v906, %v926
      %v929 = vmul.f32 %v922, %v927
      %v931 = vlaneseq
      %v932 = vshrl.u32 %v931, 7
      %v933 = vsub.s32 0, %v932
      %v934 = vrot.slane %v907, %v933
      %v936 = vadd.f32 %v929, %v934
      %v937 = vpack.c.bf16 %v936, %v936
      %v938 = vld [vmem:[%s6] sm:$0xf]
      %v939 = vld [vmem:[%s6 + $0x4] sm:$0xf]
      %v940 = vld [vmem:[%s6 + $0x8] sm:$0xf]
      %v941 = vld [vmem:[%s6 + $0xc] sm:$0xf]
      %v942 = vld [vmem:[%s7] sm:$0x1]
      %v944 = vlaneseq
      %v945 = vshrl.u32 %v944, 7
      %v946 = vsub.s32 0, %v945
      %v947 = vrot.slane %v942, %v946
      %v953 = vunpack.c.l.b16 %v938
      %v954 = vunpack.c.l.b16 %v939
      %v955 = vunpack.c.l.b16 %v940
      %v956 = vunpack.c.l.b16 %v941
      %v957 = vpack.c.b16 %v954, %v953
      %v958 = vpack.c.b16 %v956, %v955
      %v962 = vsel %vm908, %v937, 0
      %964 = vmatprep.subr.bf16.mxu0 0
      %965 = vmatpush1.bf16.msra.mxu0 %v957
      %966 = vmatprep.subr.bf16.mxu0 0
      %967 = vmatpush1.bf16.msra.mxu0 %v958
      %968 = vmatprep.subr.bf16.mxu0 0
      %969 = vmatpush1.bf16.msra.mxu0 0
      %970 = vmatprep.subr.bf16.mxu0 0
      %971 = vmatpush1.bf16.msra.mxu0 0
      %972 = vmatprep.subr.bf16.mxu0 0
      %973 = vmatpush1.bf16.msra.mxu0 0
      %974 = vmatprep.subr.bf16.mxu0 0
      %975 = vmatpush1.bf16.msra.mxu0 0
      %976 = vmatprep.subr.bf16.mxu0 0
      %977 = vmatpush1.bf16.msra.mxu0 0
      %978 = vmatprep.subr.bf16.mxu0 0
      %979 = vmatpush1.bf16.msra.mxu0 0
      %980 = vmatprep.subr.bf16.mxu0 0
      %981 = vmatpush1.bf16.msra.mxu0 0
      %982 = vmatprep.subr.bf16.mxu0 0
      %983 = vmatpush1.bf16.msra.mxu0 0
      %984 = vmatprep.subr.bf16.mxu0 0
      %985 = vmatpush1.bf16.msra.mxu0 0
      %986 = vmatprep.subr.bf16.mxu0 0
      %987 = vmatpush1.bf16.msra.mxu0 0
      %988 = vmatprep.subr.bf16.mxu0 0
      %989 = vmatpush1.bf16.msra.mxu0 0
      %990 = vmatprep.subr.bf16.mxu0 0
      %991 = vmatpush1.bf16.msra.mxu0 0
      %992 = vmatprep.subr.bf16.mxu0 0
      %993 = vmatpush1.bf16.msra.mxu0 0
      %994 = vmatprep.subr.bf16.mxu0 0
      %995 = vmatpush1.bf16.msra.mxu0 0
      %996 = vmatprep.mubr.bf16.mxu0 0
      %997 = vmatmul.mubr.bf16.gmra.mrb[0].mxu0 %v962
      %v998 = vpop.f32.mrb[0].mxu0
      %v999 = vadd.f32 %v947, %v998
      %v1000 = vpop.f32.mrb[0].mxu0
      %v1001 = vpop.f32.mrb[0].mxu0
      %v1002 = vpop.f32.mrb[0].mxu0
      %1003 = vdwg.mxu0
      %v1004 = vpack.c.bf16 %v999, %v999
      %1006 = vrot.lane.b32.xlu0 %v1004, 96
      %v1007 = vpop.permute.xlu0 %1006
      %vm1008 = vcmask 64512
      %v1010 = vsel %vm1008, %v1004, 0
      %v1013 = vsel %vm1008, %v1007, 0
      %1015 = vmatprep.subr.bf16.mxu0 0
      %1016 = vmatpush1.bf16.xpose.msra.mxu0 %v1013
      %1017 = vmatprep.subr.bf16.mxu0 0
      %1018 = vmatpush1.bf16.xpose.msra.mxu0 0
      %1019 = vmatprep.subr.bf16.mxu0 0
      %1020 = vmatpush1.bf16.xpose.msra.mxu0 0
      %1021 = vmatprep.subr.bf16.mxu0 0
      %1022 = vmatpush1.bf16.xpose.msra.mxu0 0
      %1023 = vmatprep.subr.bf16.mxu0 0
      %1024 = vmatpush1.bf16.xpose.msra.mxu0 0
      %1025 = vmatprep.subr.bf16.mxu0 0
      %1026 = vmatpush1.bf16.xpose.msra.mxu0 0
      %1027 = vmatprep.subr.bf16.mxu0 0
      %1028 = vmatpush1.bf16.xpose.msra.mxu0 0
      %1029 = vmatprep.subr.bf16.mxu0 0
      %1030 = vmatpush1.bf16.xpose.msra.mxu0 0
      %1031 = vmatprep.subr.bf16.mxu0 0
      %1032 = vmatpush1.bf16.xpose.msra.mxu0 0
      %1033 = vmatprep.subr.bf16.mxu0 0
      %1034 = vmatpush1.bf16.xpose.msra.mxu0 0
      %1035 = vmatprep.subr.bf16.mxu0 0
      %1036 = vmatpush1.bf16.xpose.msra.mxu0 0
      %1037 = vmatprep.subr.bf16.mxu0 0
      %1038 = vmatpush1.bf16.xpose.msra.mxu0 0
      %1039 = vmatprep.subr.bf16.mxu0 0
      %1040 = vmatpush1.bf16.xpose.msra.mxu0 0
      %1041 = vmatprep.subr.bf16.mxu0 0
      %1042 = vmatpush1.bf16.xpose.msra.mxu0 0
      %1043 = vmatprep.subr.bf16.mxu0 0
      %1044 = vmatpush1.bf16.xpose.msra.mxu0 0
      %1045 = vmatprep.subr.bf16.mxu0 0
      %1046 = vmatpush1.bf16.xpose.msra.mxu0 0
      %1047 = vmatprep.mubr.bf16.mxu0 0
      %1048 = vmatmul.mubr.bf16.gmra.mrb[0].mxu0 %v1010
      %v1049 = vpop.f32.mrb[0].mxu0
      %v1050 = vadd.f32 0.0, %v1049
      %v1051 = vpop.f32.mrb[0].mxu0
      %v1052 = vpop.f32.mrb[0].mxu0
      %v1053 = vpop.f32.mrb[0].mxu0
      %1054 = vdwg.mxu0
      %v1055 = vmul.f32 %v1050, 0.35355338
      %v1056 = vadd.f32 %v1055, %v905
      %v1057 = vsel %vm1008, %v1056, -inf
      %1058 = vmax.xlane.f32.xlu0 %v1057
      %v1059 = vpop.xlane.xlu0 %1058
      %v1060 = vsub.f32 %v1056, %v1059
      %v1061 = vmul.f32 %v1060, 1.442695
      %v1062 = vpow.pop %v1061
      %v1063 = vsel %vm1008, %v1062, 0.0
      %1064 = vadd.xlane.f32.xlu0 %v1063
      %v1065 = vpop.xlane.xlu0 %1064
      %v1066 = vrcp.pop %v1065
      %v1067 = vmul.f32 %v1062, %v1066
      %vm1068 = vcmp.ge.s32.totalorder %v903, 0
      %vm1069 = vcmp.lt.s32.totalorder %v903, 8
      %vm1070 = vmand %vm1068, %vm1069
      %1072 = vrot.lane.b32.xlu0 %v999, 64
      %v1073 = vpop.permute.xlu0 %1072
      %v1075 = vsel %vm1070, %v1073, 0.0
      %v1076 = vpack.c.bf16 %v1075, %v1075
      %v1077 = vpack.c.bf16 %v1067, %v1067
      %1078 = vrot.lane.b32.xlu0 %v1004, 120
      %v1079 = vpop.permute.xlu0 %1078
      %1080 = vrot.lane.b32.xlu0 %v1004, 88
      %v1081 = vpop.permute.xlu0 %1080
      %v1083 = vsel %vm1008, %v1079, 0
      %v1086 = vsel %vm1008, %v1081, 0
      %1088 = vmatprep.subr.bf16.mxu0 0
      %1089 = vmatpush1.bf16.xpose.msra.mxu0 %v1086
      %1090 = vmatprep.subr.bf16.mxu0 0
      %1091 = vmatpush1.bf16.xpose.msra.mxu0 0
      %1092 = vmatprep.subr.bf16.mxu0 0
      %1093 = vmatpush1.bf16.xpose.msra.mxu0 0
      %1094 = vmatprep.subr.bf16.mxu0 0
      %1095 = vmatpush1.bf16.xpose.msra.mxu0 0
      %1096 = vmatprep.subr.bf16.mxu0 0
      %1097 = vmatpush1.bf16.xpose.msra.mxu0 0
      %1098 = vmatprep.subr.bf16.mxu0 0
      %1099 = vmatpush1.bf16.xpose.msra.mxu0 0
      %1100 = vmatprep.subr.bf16.mxu0 0
      %1101 = vmatpush1.bf16.xpose.msra.mxu0 0
      %1102 = vmatprep.subr.bf16.mxu0 0
      %1103 = vmatpush1.bf16.xpose.msra.mxu0 0
      %1104 = vmatprep.subr.bf16.mxu0 0
      %1105 = vmatpush1.bf16.xpose.msra.mxu0 0
      %1106 = vmatprep.subr.bf16.mxu0 0
      %1107 = vmatpush1.bf16.xpose.msra.mxu0 0
      %1108 = vmatprep.subr.bf16.mxu0 0
      %1109 = vmatpush1.bf16.xpose.msra.mxu0 0
      %1110 = vmatprep.subr.bf16.mxu0 0
      %1111 = vmatpush1.bf16.xpose.msra.mxu0 0
      %1112 = vmatprep.subr.bf16.mxu0 0
      %1113 = vmatpush1.bf16.xpose.msra.mxu0 0
      %1114 = vmatprep.subr.bf16.mxu0 0
      %1115 = vmatpush1.bf16.xpose.msra.mxu0 0
      %1116 = vmatprep.subr.bf16.mxu0 0
      %1117 = vmatpush1.bf16.xpose.msra.mxu0 0
      %1118 = vmatprep.subr.bf16.mxu0 0
      %1119 = vmatpush1.bf16.xpose.msra.mxu0 0
      %1120 = vmatprep.mubr.bf16.mxu0 0
      %1121 = vmatmul.mubr.bf16.gmra.mrb[0].mxu0 %v1083
      %v1122 = vpop.f32.mrb[0].mxu0
      %v1123 = vadd.f32 0.0, %v1122
      %v1124 = vpop.f32.mrb[0].mxu0
      %v1125 = vpop.f32.mrb[0].mxu0
      %v1126 = vpop.f32.mrb[0].mxu0
      %1127 = vdwg.mxu0
      %v1128 = vmul.f32 %v1123, 0.35355338
      %v1129 = vadd.f32 %v1128, %v905
      %v1130 = vsel %vm1008, %v1129, -inf
      %1131 = vmax.xlane.f32.xlu0 %v1130
      %v1132 = vpop.xlane.xlu0 %1131
      %v1133 = vsub.f32 %v1129, %v1132
      %v1134 = vmul.f32 %v1133, 1.442695
      %v1135 = vpow.pop %v1134
      %v1136 = vsel %vm1008, %v1135, 0.0
      %1137 = vadd.xlane.f32.xlu0 %v1136
      %v1138 = vpop.xlane.xlu0 %1137
      %v1139 = vrcp.pop %v1138
      %v1140 = vmul.f32 %v1135, %v1139
      %vm1141 = vcmp.ge.s32.totalorder %v903, 8
      %vm1142 = vcmp.lt.s32.totalorder %v903, 16
      %vm1143 = vmand %vm1141, %vm1142
      %v1144 = vsel %vm1143, %v1073, 0.0
      %v1145 = vpack.c.bf16 %v1144, %v1144
      %v1146 = vpack.c.bf16 %v1140, %v1140
      %v1148 = vsel %vm1008, %v1146, 0
      %vm1150 = vcmask 1043456
      %v1152 = vsel %vm1150, %v1145, 0
      %1154 = vmatprep.subr.bf16.mxu0 0
      %1155 = vmatpush1.bf16.msra.mxu0 %v1152
      %1156 = vmatprep.subr.bf16.mxu0 0
      %1157 = vmatpush1.bf16.msra.mxu0 0
      %1158 = vmatprep.subr.bf16.mxu0 0
      %1159 = vmatpush1.bf16.msra.mxu0 0
      %1160 = vmatprep.subr.bf16.mxu0 0
      %1161 = vmatpush1.bf16.msra.mxu0 0
      %1162 = vmatprep.subr.bf16.mxu0 0
      %1163 = vmatpush1.bf16.msra.mxu0 0
      %1164 = vmatprep.subr.bf16.mxu0 0
      %1165 = vmatpush1.bf16.msra.mxu0 0
      %1166 = vmatprep.subr.bf16.mxu0 0
      %1167 = vmatpush1.bf16.msra.mxu0 0
      %1168 = vmatprep.subr.bf16.mxu0 0
      %1169 = vmatpush1.bf16.msra.mxu0 0
      %1170 = vmatprep.subr.bf16.mxu0 0
      %1171 = vmatpush1.bf16.msra.mxu0 0
      %1172 = vmatprep.subr.bf16.mxu0 0
      %1173 = vmatpush1.bf16.msra.mxu0 0
      %1174 = vmatprep.subr.bf16.mxu0 0
      %1175 = vmatpush1.bf16.msra.mxu0 0
      %1176 = vmatprep.subr.bf16.mxu0 0
      %1177 = vmatpush1.bf16.msra.mxu0 0
      %1178 = vmatprep.subr.bf16.mxu0 0
      %1179 = vmatpush1.bf16.msra.mxu0 0
      %1180 = vmatprep.subr.bf16.mxu0 0
      %1181 = vmatpush1.bf16.msra.mxu0 0
      %1182 = vmatprep.subr.bf16.mxu0 0
      %1183 = vmatpush1.bf16.msra.mxu0 0
      %1184 = vmatprep.subr.bf16.mxu0 0
      %1185 = vmatpush1.bf16.msra.mxu0 0
      %1186 = vmatprep.mubr.bf16.mxu0 0
      %1187 = vmatmul.mubr.bf16.gmra.mrb[0].mxu0 %v1148
      %v1188 = vpop.f32.mrb[0].mxu0
      %v1189 = vadd.f32 0.0, %v1188
      %v1190 = vpop.f32.mrb[0].mxu0
      %v1191 = vpop.f32.mrb[0].mxu0
      %v1192 = vpop.f32.mrb[0].mxu0
      %1193 = vdwg.mxu0
      %v1195 = vsel %vm1008, %v1077, 0
      %v1198 = vsel %vm1150, %v1076, 0
      %1200 = vmatprep.subr.bf16.mxu0 0
      %1201 = vmatpush1.bf16.msra.mxu0 %v1198
      %1202 = vmatprep.subr.bf16.mxu0 0
      %1203 = vmatpush1.bf16.msra.mxu0 0
      %1204 = vmatprep.subr.bf16.mxu0 0
      %1205 = vmatpush1.bf16.msra.mxu0 0
      %1206 = vmatprep.subr.bf16.mxu0 0
      %1207 = vmatpush1.bf16.msra.mxu0 0
      %1208 = vmatprep.subr.bf16.mxu0 0
      %1209 = vmatpush1.bf16.msra.mxu0 0
      %1210 = vmatprep.subr.bf16.mxu0 0
      %1211 = vmatpush1.bf16.msra.mxu0 0
      %1212 = vmatprep.subr.bf16.mxu0 0
      %1213 = vmatpush1.bf16.msra.mxu0 0
      %1214 = vmatprep.subr.bf16.mxu0 0
      %1215 = vmatpush1.bf16.msra.mxu0 0
      %1216 = vmatprep.subr.bf16.mxu0 0
      %1217 = vmatpush1.bf16.msra.mxu0 0
      %1218 = vmatprep.subr.bf16.mxu0 0
      %1219 = vmatpush1.bf16.msra.mxu0 0
      %1220 = vmatprep.subr.bf16.mxu0 0
      %1221 = vmatpush1.bf16.msra.mxu0 0
      %1222 = vmatprep.subr.bf16.mxu0 0
      %1223 = vmatpush1.bf16.msra.mxu0 0
      %1224 = vmatprep.subr.bf16.mxu0 0
      %1225 = vmatpush1.bf16.msra.mxu0 0
      %1226 = vmatprep.subr.bf16.mxu0 0
      %1227 = vmatpush1.bf16.msra.mxu0 0
      %1228 = vmatprep.subr.bf16.mxu0 0
      %1229 = vmatpush1.bf16.msra.mxu0 0
      %1230 = vmatprep.subr.bf16.mxu0 0
      %1231 = vmatpush1.bf16.msra.mxu0 0
      %1232 = vmatprep.mubr.bf16.mxu0 0
      %1233 = vmatmul.mubr.bf16.gmra.mrb[0].mxu0 %v1195
      %v1234 = vpop.f32.mrb[0].mxu0
      %v1235 = vadd.f32 %v1189, %v1234
      %v1236 = vpop.f32.mrb[0].mxu0
      %v1237 = vpop.f32.mrb[0].mxu0
      %v1238 = vpop.f32.mrb[0].mxu0
      %1239 = vdwg.mxu0
      %1240 = vrot.lane.b32.xlu0 %v1004, 112
      %v1241 = vpop.permute.xlu0 %1240
      %1242 = vrot.lane.b32.xlu0 %v1004, 80
      %v1243 = vpop.permute.xlu0 %1242
      %v1245 = vsel %vm1008, %v1241, 0
      %v1248 = vsel %vm1008, %v1243, 0
      %1250 = vmatprep.subr.bf16.mxu0 0
      %1251 = vmatpush1.bf16.xpose.msra.mxu0 %v1248
      %1252 = vmatprep.subr.bf16.mxu0 0
      %1253 = vmatpush1.bf16.xpose.msra.mxu0 0
      %1254 = vmatprep.subr.bf16.mxu0 0
      %1255 = vmatpush1.bf16.xpose.msra.mxu0 0
      %1256 = vmatprep.subr.bf16.mxu0 0
      %1257 = vmatpush1.bf16.xpose.msra.mxu0 0
      %1258 = vmatprep.subr.bf16.mxu0 0
      %1259 = vmatpush1.bf16.xpose.msra.mxu0 0
      %1260 = vmatprep.subr.bf16.mxu0 0
      %1261 = vmatpush1.bf16.xpose.msra.mxu0 0
      %1262 = vmatprep.subr.bf16.mxu0 0
      %1263 = vmatpush1.bf16.xpose.msra.mxu0 0
      %1264 = vmatprep.subr.bf16.mxu0 0
      %1265 = vmatpush1.bf16.xpose.msra.mxu0 0
      %1266 = vmatprep.subr.bf16.mxu0 0
      %1267 = vmatpush1.bf16.xpose.msra.mxu0 0
      %1268 = vmatprep.subr.bf16.mxu0 0
      %1269 = vmatpush1.bf16.xpose.msra.mxu0 0
      %1270 = vmatprep.subr.bf16.mxu0 0
      %1271 = vmatpush1.bf16.xpose.msra.mxu0 0
      %1272 = vmatprep.subr.bf16.mxu0 0
      %1273 = vmatpush1.bf16.xpose.msra.mxu0 0
      %1274 = vmatprep.subr.bf16.mxu0 0
      %1275 = vmatpush1.bf16.xpose.msra.mxu0 0
      %1276 = vmatprep.subr.bf16.mxu0 0
      %1277 = vmatpush1.bf16.xpose.msra.mxu0 0
      %1278 = vmatprep.subr.bf16.mxu0 0
      %1279 = vmatpush1.bf16.xpose.msra.mxu0 0
      %1280 = vmatprep.subr.bf16.mxu0 0
      %1281 = vmatpush1.bf16.xpose.msra.mxu0 0
      %1282 = vmatprep.mubr.bf16.mxu0 0
      %1283 = vmatmul.mubr.bf16.gmra.mrb[0].mxu0 %v1245
      %v1284 = vpop.f32.mrb[0].mxu0
      %v1285 = vadd.f32 0.0, %v1284
      %v1286 = vpop.f32.mrb[0].mxu0
      %v1287 = vpop.f32.mrb[0].mxu0
      %v1288 = vpop.f32.mrb[0].mxu0
      %1289 = vdwg.mxu0
      %v1290 = vmul.f32 %v1285, 0.35355338
      %v1291 = vadd.f32 %v1290, %v905
      %v1292 = vsel %vm1008, %v1291, -inf
      %1293 = vmax.xlane.f32.xlu0 %v1292
      %v1294 = vpop.xlane.xlu0 %1293
      %v1295 = vsub.f32 %v1291, %v1294
      %v1296 = vmul.f32 %v1295, 1.442695
      %v1297 = vpow.pop %v1296
      %v1298 = vsel %vm1008, %v1297, 0.0
      %1299 = vadd.xlane.f32.xlu0 %v1298
      %v1300 = vpop.xlane.xlu0 %1299
      %v1301 = vrcp.pop %v1300
      %v1302 = vmul.f32 %v1297, %v1301
      %vm1303 = vcmp.ge.s32.totalorder %v903, 16
      %vm1304 = vcmp.lt.s32.totalorder %v903, 24
      %vm1305 = vmand %vm1303, %vm1304
      %v1306 = vsel %vm1305, %v1073, 0.0
      %v1307 = vpack.c.bf16 %v1306, %v1306
      %v1308 = vpack.c.bf16 %v1302, %v1302
      %v1310 = vsel %vm1008, %v1308, 0
      %v1313 = vsel %vm1150, %v1307, 0
      %1315 = vmatprep.subr.bf16.mxu0 0
      %1316 = vmatpush1.bf16.msra.mxu0 %v1313
      %1317 = vmatprep.subr.bf16.mxu0 0
      %1318 = vmatpush1.bf16.msra.mxu0 0
      %1319 = vmatprep.subr.bf16.mxu0 0
      %1320 = vmatpush1.bf16.msra.mxu0 0
      %1321 = vmatprep.subr.bf16.mxu0 0
      %1322 = vmatpush1.bf16.msra.mxu0 0
      %1323 = vmatprep.subr.bf16.mxu0 0
      %1324 = vmatpush1.bf16.msra.mxu0 0
      %1325 = vmatprep.subr.bf16.mxu0 0
      %1326 = vmatpush1.bf16.msra.mxu0 0
      %1327 = vmatprep.subr.bf16.mxu0 0
      %1328 = vmatpush1.bf16.msra.mxu0 0
      %1329 = vmatprep.subr.bf16.mxu0 0
      %1330 = vmatpush1.bf16.msra.mxu0 0
      %1331 = vmatprep.subr.bf16.mxu0 0
      %1332 = vmatpush1.bf16.msra.mxu0 0
      %1333 = vmatprep.subr.bf16.mxu0 0
      %1334 = vmatpush1.bf16.msra.mxu0 0
      %1335 = vmatprep.subr.bf16.mxu0 0
      %1336 = vmatpush1.bf16.msra.mxu0 0
      %1337 = vmatprep.subr.bf16.mxu0 0
      %1338 = vmatpush1.bf16.msra.mxu0 0
      %1339 = vmatprep.subr.bf16.mxu0 0
      %1340 = vmatpush1.bf16.msra.mxu0 0
      %1341 = vmatprep.subr.bf16.mxu0 0
      %1342 = vmatpush1.bf16.msra.mxu0 0
      %1343 = vmatprep.subr.bf16.mxu0 0
      %1344 = vmatpush1.bf16.msra.mxu0 0
      %1345 = vmatprep.subr.bf16.mxu0 0
      %1346 = vmatpush1.bf16.msra.mxu0 0
      %1347 = vmatprep.mubr.bf16.mxu0 0
      %1348 = vmatmul.mubr.bf16.gmra.mrb[0].mxu0 %v1310
      %v1349 = vpop.f32.mrb[0].mxu0
      %v1350 = vadd.f32 0.0, %v1349
      %v1351 = vpop.f32.mrb[0].mxu0
      %v1352 = vpop.f32.mrb[0].mxu0
      %v1353 = vpop.f32.mrb[0].mxu0
      %1354 = vdwg.mxu0
      %v1355 = vadd.f32 %v1235, %v1350
      %1356 = vrot.lane.b32.xlu0 %v1004, 104
      %v1357 = vpop.permute.xlu0 %1356
      %1358 = vrot.lane.b32.xlu0 %v1004, 72
      %v1359 = vpop.permute.xlu0 %1358
      %v1361 = vsel %vm1008, %v1357, 0
      %v1364 = vsel %vm1008, %v1359, 0
      %1366 = vmatprep.subr.bf16.mxu0 0
      %1367 = vmatpush1.bf16.xpose.msra.mxu0 %v1364
      %1368 = vmatprep.subr.bf16.mxu0 0
      %1369 = vmatpush1.bf16.xpose.msra.mxu0 0
      %1370 = vmatprep.subr.bf16.mxu0 0
      %1371 = vmatpush1.bf16.xpose.msra.mxu0 0
      %1372 = vmatprep.subr.bf16.mxu0 0
      %1373 = vmatpush1.bf16.xpose.msra.mxu0 0
      %1374 = vmatprep.subr.bf16.mxu0 0
      %1375 = vmatpush1.bf16.xpose.msra.mxu0 0
      %1376 = vmatprep.subr.bf16.mxu0 0
      %1377 = vmatpush1.bf16.xpose.msra.mxu0 0
      %1378 = vmatprep.subr.bf16.mxu0 0
      %1379 = vmatpush1.bf16.xpose.msra.mxu0 0
      %1380 = vmatprep.subr.bf16.mxu0 0
      %1381 = vmatpush1.bf16.xpose.msra.mxu0 0
      %1382 = vmatprep.subr.bf16.mxu0 0
      %1383 = vmatpush1.bf16.xpose.msra.mxu0 0
      %1384 = vmatprep.subr.bf16.mxu0 0
      %1385 = vmatpush1.bf16.xpose.msra.mxu0 0
      %1386 = vmatprep.subr.bf16.mxu0 0
      %1387 = vmatpush1.bf16.xpose.msra.mxu0 0
      %1388 = vmatprep.subr.bf16.mxu0 0
      %1389 = vmatpush1.bf16.xpose.msra.mxu0 0
      %1390 = vmatprep.subr.bf16.mxu0 0
      %1391 = vmatpush1.bf16.xpose.msra.mxu0 0
      %1392 = vmatprep.subr.bf16.mxu0 0
      %1393 = vmatpush1.bf16.xpose.msra.mxu0 0
      %1394 = vmatprep.subr.bf16.mxu0 0
      %1395 = vmatpush1.bf16.xpose.msra.mxu0 0
      %1396 = vmatprep.subr.bf16.mxu0 0
      %1397 = vmatpush1.bf16.xpose.msra.mxu0 0
      %1398 = vmatprep.mubr.bf16.mxu0 0
      %1399 = vmatmul.mubr.bf16.gmra.mrb[0].mxu0 %v1361
      %v1400 = vpop.f32.mrb[0].mxu0
      %v1401 = vadd.f32 0.0, %v1400
      %v1402 = vpop.f32.mrb[0].mxu0
      %v1403 = vpop.f32.mrb[0].mxu0
      %v1404 = vpop.f32.mrb[0].mxu0
      %1405 = vdwg.mxu0
      %v1406 = vmul.f32 %v1401, 0.35355338
      %v1407 = vadd.f32 %v1406, %v905
      %v1408 = vsel %vm1008, %v1407, -inf
      %1409 = vmax.xlane.f32.xlu0 %v1408
      %v1410 = vpop.xlane.xlu0 %1409
      %v1411 = vsub.f32 %v1407, %v1410
      %v1412 = vmul.f32 %v1411, 1.442695
      %v1413 = vpow.pop %v1412
      %v1414 = vsel %vm1008, %v1413, 0.0
      %1415 = vadd.xlane.f32.xlu0 %v1414
      %v1416 = vpop.xlane.xlu0 %1415
      %v1417 = vrcp.pop %v1416
      %v1418 = vmul.f32 %v1413, %v1417
      %vm1419 = vcmp.ge.s32.totalorder %v903, 24
      %vm1420 = vcmp.lt.s32.totalorder %v903, 32
      %vm1421 = vmand %vm1419, %vm1420
      %v1422 = vsel %vm1421, %v1073, 0.0
      %v1423 = vpack.c.bf16 %v1422, %v1422
      %v1424 = vpack.c.bf16 %v1418, %v1418
      %v1426 = vsel %vm1008, %v1424, 0
      %v1429 = vsel %vm1150, %v1423, 0
      %1431 = vmatprep.subr.bf16.mxu0 0
      %1432 = vmatpush1.bf16.msra.mxu0 %v1429
      %1433 = vmatprep.subr.bf16.mxu0 0
      %1434 = vmatpush1.bf16.msra.mxu0 0
      %1435 = vmatprep.subr.bf16.mxu0 0
      %1436 = vmatpush1.bf16.msra.mxu0 0
      %1437 = vmatprep.subr.bf16.mxu0 0
      %1438 = vmatpush1.bf16.msra.mxu0 0
      %1439 = vmatprep.subr.bf16.mxu0 0
      %1440 = vmatpush1.bf16.msra.mxu0 0
      %1441 = vmatprep.subr.bf16.mxu0 0
      %1442 = vmatpush1.bf16.msra.mxu0 0
      %1443 = vmatprep.subr.bf16.mxu0 0
      %1444 = vmatpush1.bf16.msra.mxu0 0
      %1445 = vmatprep.subr.bf16.mxu0 0
      %1446 = vmatpush1.bf16.msra.mxu0 0
      %1447 = vmatprep.subr.bf16.mxu0 0
      %1448 = vmatpush1.bf16.msra.mxu0 0
      %1449 = vmatprep.subr.bf16.mxu0 0
      %1450 = vmatpush1.bf16.msra.mxu0 0
      %1451 = vmatprep.subr.bf16.mxu0 0
      %1452 = vmatpush1.bf16.msra.mxu0 0
      %1453 = vmatprep.subr.bf16.mxu0 0
      %1454 = vmatpush1.bf16.msra.mxu0 0
      %1455 = vmatprep.subr.bf16.mxu0 0
      %1456 = vmatpush1.bf16.msra.mxu0 0
      %1457 = vmatprep.subr.bf16.mxu0 0
      %1458 = vmatpush1.bf16.msra.mxu0 0
      %1459 = vmatprep.subr.bf16.mxu0 0
      %1460 = vmatpush1.bf16.msra.mxu0 0
      %1461 = vmatprep.subr.bf16.mxu0 0
      %1462 = vmatpush1.bf16.msra.mxu0 0
      %1463 = vmatprep.mubr.bf16.mxu0 0
      %1464 = vmatmul.mubr.bf16.gmra.mrb[0].mxu0 %v1426
      %v1465 = vpop.f32.mrb[0].mxu0
      %v1466 = vadd.f32 0.0, %v1465
      %v1467 = vpop.f32.mrb[0].mxu0
      %v1468 = vpop.f32.mrb[0].mxu0
      %v1469 = vpop.f32.mrb[0].mxu0
      %1470 = vdwg.mxu0
      %v1471 = vadd.f32 %v1355, %v1466
      %v1472 = vpack.c.bf16 %v1471, %v1471
      %v1473 = vld [vmem:[%s8] sm:$0xf]
      %v1474 = vld [vmem:[%s8 + $0x4] sm:$0xf]
      %v1475 = vld [vmem:[%s8 + $0x8] sm:$0xf]
      %v1476 = vld [vmem:[%s8 + $0xc] sm:$0xf]
      %v1481 = vunpack.c.l.b16 %v1473
      %v1482 = vunpack.c.l.b16 %v1474
      %v1483 = vunpack.c.l.b16 %v1475
      %v1484 = vunpack.c.l.b16 %v1476
      %v1485 = vpack.c.b16 %v1482, %v1481
      %v1486 = vpack.c.b16 %v1484, %v1483
      %v1490 = vsel %vm908, %v1472, 0
      %1492 = vmatprep.subr.bf16.mxu0 0
      %1493 = vmatpush1.bf16.msra.mxu0 %v1485
      %1494 = vmatprep.subr.bf16.mxu0 0
      %1495 = vmatpush1.bf16.msra.mxu0 %v1486
      %1496 = vmatprep.subr.bf16.mxu0 0
      %1497 = vmatpush1.bf16.msra.mxu0 0
      %1498 = vmatprep.subr.bf16.mxu0 0
      %1499 = vmatpush1.bf16.msra.mxu0 0
      %1500 = vmatprep.subr.bf16.mxu0 0
      %1501 = vmatpush1.bf16.msra.mxu0 0
      %1502 = vmatprep.subr.bf16.mxu0 0
      %1503 = vmatpush1.bf16.msra.mxu0 0
      %1504 = vmatprep.subr.bf16.mxu0 0
      %1505 = vmatpush1.bf16.msra.mxu0 0
      %1506 = vmatprep.subr.bf16.mxu0 0
      %1507 = vmatpush1.bf16.msra.mxu0 0
      %1508 = vmatprep.subr.bf16.mxu0 0
      %1509 = vmatpush1.bf16.msra.mxu0 0
      %1510 = vmatprep.subr.bf16.mxu0 0
      %1511 = vmatpush1.bf16.msra.mxu0 0
      %1512 = vmatprep.subr.bf16.mxu0 0
      %1513 = vmatpush1.bf16.msra.mxu0 0
      %1514 = vmatprep.subr.bf16.mxu0 0
      %1515 = vmatpush1.bf16.msra.mxu0 0
      %1516 = vmatprep.subr.bf16.mxu0 0
      %1517 = vmatpush1.bf16.msra.mxu0 0
      %1518 = vmatprep.subr.bf16.mxu0 0
      %1519 = vmatpush1.bf16.msra.mxu0 0
      %1520 = vmatprep.subr.bf16.mxu0 0
      %1521 = vmatpush1.bf16.msra.mxu0 0
      %1522 = vmatprep.subr.bf16.mxu0 0
      %1523 = vmatpush1.bf16.msra.mxu0 0
      %1524 = vmatprep.mubr.bf16.mxu0 0
      %1525 = vmatmul.mubr.bf16.gmra.mrb[0].mxu0 %v1490
      %v1526 = vpop.f32.mrb[0].mxu0
      %v1527 = vadd.f32 0.0, %v1526
      %v1528 = vpop.f32.mrb[0].mxu0
      %v1529 = vpop.f32.mrb[0].mxu0
      %v1530 = vpop.f32.mrb[0].mxu0
      %1531 = vdwg.mxu0
      %v1532 = vadd.f32 %v901, %v1527
      %v1533 = vld [vmem:[%s9] sm:$0x1]
      %v1535 = vlaneseq
      %v1536 = vshrl.u32 %v1535, 7
      %v1537 = vsub.s32 0, %v1536
      %v1538 = vrot.slane %v1533, %v1537
      %v1540 = vadd.f32 %v1532, %v1538
      %v1541 = vld [vmem:[%s10] sm:$0x1]
      %v1542 = vld [vmem:[%s11] sm:$0x1]
      %v1543 = vsel %vm908, %v1540, 0.0
      %1544 = vadd.xlane.f32.xlu0 %v1543
      %v1545 = vpop.xlane.xlu0 %1544
      %v1546 = vmul.f32 %v1545, %v912
      %v1547 = vsub.f32 %v1540, %v1546
      %v1548 = vmul.f32 %v1547, %v1547
      %v1549 = vsel %vm908, %v1548, 0.0
      %1550 = vadd.xlane.f32.xlu0 %v1549
      %v1551 = vpop.xlane.xlu0 %1550
      %v1552 = vmul.f32 %v1551, %v912
      %v1553 = vadd.f32 %v1552, 1e-05
      %v1554 = vrsqrt.pop %v1553
      %v1555 = vmul.f32 %v1547, %v1554
      %v1557 = vlaneseq
      %v1558 = vshrl.u32 %v1557, 7
      %v1559 = vsub.s32 0, %v1558
      %v1560 = vrot.slane %v1541, %v1559
      %v1562 = vmul.f32 %v1555, %v1560
      %v1564 = vlaneseq
      %v1565 = vshrl.u32 %v1564, 7
      %v1566 = vsub.s32 0, %v1565
      %v1567 = vrot.slane %v1542, %v1566
      %v1569 = vadd.f32 %v1562, %v1567
      %v1570 = vpack.c.bf16 %v1569, %v1569
      %v1571 = vld [vmem:[%s12] sm:$0xf]
      %v1572 = vld [vmem:[%s12 + $0x4] sm:$0xf]
      %v1573 = vld [vmem:[%s12 + $0x8] sm:$0xf]
      %v1574 = vld [vmem:[%s12 + $0xc] sm:$0xf]
      %v1575 = vld [vmem:[%s13] sm:$0x1]
      %v1577 = vlaneseq
      %v1578 = vshrl.u32 %v1577, 7
      %v1579 = vsub.s32 0, %v1578
      %v1580 = vrot.slane %v1575, %v1579
      %v1586 = vunpack.c.l.b16 %v1571
      %v1587 = vunpack.c.l.b16 %v1572
      %v1588 = vunpack.c.l.b16 %v1573
      %v1589 = vunpack.c.l.b16 %v1574
      %v1590 = vpack.c.b16 %v1587, %v1586
      %v1591 = vpack.c.b16 %v1589, %v1588
      %v1595 = vsel %vm908, %v1570, 0
      %1597 = vmatprep.subr.bf16.mxu0 0
      %1598 = vmatpush1.bf16.msra.mxu0 %v1590
      %1599 = vmatprep.subr.bf16.mxu0 0
      %1600 = vmatpush1.bf16.msra.mxu0 %v1591
      %1601 = vmatprep.subr.bf16.mxu0 0
      %1602 = vmatpush1.bf16.msra.mxu0 0
      %1603 = vmatprep.subr.bf16.mxu0 0
      %1604 = vmatpush1.bf16.msra.mxu0 0
      %1605 = vmatprep.subr.bf16.mxu0 0
      %1606 = vmatpush1.bf16.msra.mxu0 0
      %1607 = vmatprep.subr.bf16.mxu0 0
      %1608 = vmatpush1.bf16.msra.mxu0 0
      %1609 = vmatprep.subr.bf16.mxu0 0
      %1610 = vmatpush1.bf16.msra.mxu0 0
      %1611 = vmatprep.subr.bf16.mxu0 0
      %1612 = vmatpush1.bf16.msra.mxu0 0
      %1613 = vmatprep.subr.bf16.mxu0 0
      %1614 = vmatpush1.bf16.msra.mxu0 0
      %1615 = vmatprep.subr.bf16.mxu0 0
      %1616 = vmatpush1.bf16.msra.mxu0 0
      %1617 = vmatprep.subr.bf16.mxu0 0
      %1618 = vmatpush1.bf16.msra.mxu0 0
      %1619 = vmatprep.subr.bf16.mxu0 0
      %1620 = vmatpush1.bf16.msra.mxu0 0
      %1621 = vmatprep.subr.bf16.mxu0 0
      %1622 = vmatpush1.bf16.msra.mxu0 0
      %1623 = vmatprep.subr.bf16.mxu0 0
      %1624 = vmatpush1.bf16.msra.mxu0 0
      %1625 = vmatprep.subr.bf16.mxu0 0
      %1626 = vmatpush1.bf16.msra.mxu0 0
      %1627 = vmatprep.subr.bf16.mxu0 0
      %1628 = vmatpush1.bf16.msra.mxu0 0
      %1629 = vmatprep.mubr.bf16.mxu0 0
      %1630 = vmatmul.mubr.bf16.gmra.mrb[0].mxu0 %v1595
      %v1631 = vpop.f32.mrb[0].mxu0
      %v1632 = vadd.f32 %v1580, %v1631
      %v1633 = vpop.f32.mrb[0].mxu0
      %v1634 = vpop.f32.mrb[0].mxu0
      %v1635 = vpop.f32.mrb[0].mxu0
      %1636 = vdwg.mxu0
      %v1637 = vmul.f32 %v1632, %v1632
      %v1638 = vmul.f32 %v1632, %v1637
      %v1639 = vmul.f32 %v1638, 0.044715
      %v1640 = vadd.f32 %v1632, %v1639
      %v1641 = vmul.f32 %v1640, 0.7978846
      %v1642 = vtanh.pop %v1641
      %v1643 = vadd.f32 %v1642, 1.0
      %v1644 = vmul.f32 %v1643, 0.5
      %v1645 = vmul.f32 %v1632, %v1644
      %v1646 = vpack.c.bf16 %v1645, %v1645
      %v1647 = vld [vmem:[%s14] sm:$0xf]
      %v1648 = vld [vmem:[%s14 + $0x4] sm:$0xf]
      %v1649 = vld [vmem:[%s14 + $0x8] sm:$0xf]
      %v1650 = vld [vmem:[%s14 + $0xc] sm:$0xf]
      %v1651 = vld [vmem:[%s14 + $0x10] sm:$0xf]
      %v1652 = vld [vmem:[%s14 + $0x14] sm:$0xf]
      %v1653 = vld [vmem:[%s14 + $0x18] sm:$0xf]
      %v1654 = vld [vmem:[%s14 + $0x1c] sm:$0xf]
      %v1663 = vunpack.c.l.b16 %v1647
      %v1664 = vunpack.c.l.b16 %v1648
      %v1665 = vunpack.c.l.b16 %v1649
      %v1666 = vunpack.c.l.b16 %v1650
      %v1667 = vunpack.c.l.b16 %v1651
      %v1668 = vunpack.c.l.b16 %v1652
      %v1669 = vunpack.c.l.b16 %v1653
      %v1670 = vunpack.c.l.b16 %v1654
      %v1671 = vpack.c.b16 %v1664, %v1663
      %v1672 = vpack.c.b16 %v1666, %v1665
      %v1673 = vpack.c.b16 %v1668, %v1667
      %v1674 = vpack.c.b16 %v1670, %v1669
      %v1680 = vsel %vm847, %v1646, 0
      %1682 = vmatprep.subr.bf16.mxu0 0
      %1683 = vmatpush1.bf16.msra.mxu0 %v1671
      %1684 = vmatprep.subr.bf16.mxu0 0
      %1685 = vmatpush1.bf16.msra.mxu0 %v1672
      %1686 = vmatprep.subr.bf16.mxu0 0
      %1687 = vmatpush1.bf16.msra.mxu0 %v1673
      %1688 = vmatprep.subr.bf16.mxu0 0
      %1689 = vmatpush1.bf16.msra.mxu0 %v1674
      %1690 = vmatprep.subr.bf16.mxu0 0
      %1691 = vmatpush1.bf16.msra.mxu0 0
      %1692 = vmatprep.subr.bf16.mxu0 0
      %1693 = vmatpush1.bf16.msra.mxu0 0
      %1694 = vmatprep.subr.bf16.mxu0 0
      %1695 = vmatpush1.bf16.msra.mxu0 0
      %1696 = vmatprep.subr.bf16.mxu0 0
      %1697 = vmatpush1.bf16.msra.mxu0 0
      %1698 = vmatprep.subr.bf16.mxu0 0
      %1699 = vmatpush1.bf16.msra.mxu0 0
      %1700 = vmatprep.subr.bf16.mxu0 0
      %1701 = vmatpush1.bf16.msra.mxu0 0
      %1702 = vmatprep.subr.bf16.mxu0 0
      %1703 = vmatpush1.bf16.msra.mxu0 0
      %1704 = vmatprep.subr.bf16.mxu0 0
      %1705 = vmatpush1.bf16.msra.mxu0 0
      %1706 = vmatprep.subr.bf16.mxu0 0
      %1707 = vmatpush1.bf16.msra.mxu0 0
      %1708 = vmatprep.subr.bf16.mxu0 0
      %1709 = vmatpush1.bf16.msra.mxu0 0
      %1710 = vmatprep.subr.bf16.mxu0 0
      %1711 = vmatpush1.bf16.msra.mxu0 0
      %1712 = vmatprep.subr.bf16.mxu0 0
      %1713 = vmatpush1.bf16.msra.mxu0 0
      %1714 = vmatprep.mubr.bf16.mxu0 0
      %1715 = vmatmul.mubr.bf16.gmra.mrb[0].mxu0 %v1680
      %v1716 = vpop.f32.mrb[0].mxu0
      %v1717 = vadd.f32 0.0, %v1716
      %v1718 = vpop.f32.mrb[0].mxu0
      %v1719 = vpop.f32.mrb[0].mxu0
      %v1720 = vpop.f32.mrb[0].mxu0
      %1721 = vdwg.mxu0
      %v1722 = vadd.f32 %v1540, %v1717
      %v1723 = vld [vmem:[%s15] sm:$0x1]
      %v1725 = vlaneseq
      %v1726 = vshrl.u32 %v1725, 7
      %v1727 = vsub.s32 0, %v1726
      %v1728 = vrot.slane %v1723, %v1727
      %v1730 = vadd.f32 %v1722, %v1728
      %v1731 = vpack.c.bf16 %v1730, %v1730
      %v1732 = vld [vmem:[%s16] sm:$0xf]
      %v1733 = vld [vmem:[%s16 + $0x4] sm:$0xf]
      %v1734 = vld [vmem:[%s16 + $0x8] sm:$0xf]
      %v1735 = vld [vmem:[%s16 + $0xc] sm:$0xf]
      %v1736 = vld [vmem:[%s17] sm:$0x1]
      %v1738 = vrot.slane %v1731, 2
      %v1743 = vunpack.c.l.b16 %v1732
      %v1744 = vunpack.c.l.b16 %v1733
      %v1745 = vunpack.c.l.b16 %v1734
      %v1746 = vunpack.c.l.b16 %v1735
      %v1747 = vpack.c.b16 %v1744, %v1743
      %v1748 = vpack.c.b16 %v1746, %v1745
      %v1752 = vsel %vm908, %v1738, 0
      %1754 = vmatprep.subr.bf16.mxu0 0
      %1755 = vmatpush1.bf16.msra.mxu0 %v1747
      %1756 = vmatprep.subr.bf16.mxu0 0
      %1757 = vmatpush1.bf16.msra.mxu0 %v1748
      %1758 = vmatprep.subr.bf16.mxu0 0
      %1759 = vmatpush1.bf16.msra.mxu0 0
      %1760 = vmatprep.subr.bf16.mxu0 0
      %1761 = vmatpush1.bf16.msra.mxu0 0
      %1762 = vmatprep.subr.bf16.mxu0 0
      %1763 = vmatpush1.bf16.msra.mxu0 0
      %1764 = vmatprep.subr.bf16.mxu0 0
      %1765 = vmatpush1.bf16.msra.mxu0 0
      %1766 = vmatprep.subr.bf16.mxu0 0
      %1767 = vmatpush1.bf16.msra.mxu0 0
      %1768 = vmatprep.subr.bf16.mxu0 0
      %1769 = vmatpush1.bf16.msra.mxu0 0
      %1770 = vmatprep.subr.bf16.mxu0 0
      %1771 = vmatpush1.bf16.msra.mxu0 0
      %1772 = vmatprep.subr.bf16.mxu0 0
      %1773 = vmatpush1.bf16.msra.mxu0 0
      %1774 = vmatprep.subr.bf16.mxu0 0
      %1775 = vmatpush1.bf16.msra.mxu0 0
      %1776 = vmatprep.subr.bf16.mxu0 0
      %1777 = vmatpush1.bf16.msra.mxu0 0
      %1778 = vmatprep.subr.bf16.mxu0 0
      %1779 = vmatpush1.bf16.msra.mxu0 0
      %1780 = vmatprep.subr.bf16.mxu0 0
      %1781 = vmatpush1.bf16.msra.mxu0 0
      %1782 = vmatprep.subr.bf16.mxu0 0
      %1783 = vmatpush1.bf16.msra.mxu0 0
      %1784 = vmatprep.subr.bf16.mxu0 0
      %1785 = vmatpush1.bf16.msra.mxu0 0
      %1786 = vmatprep.mubr.bf16.mxu0 0
      %1787 = vmatmul.mubr.bf16.gmra.mrb[0].mxu0 %v1752
      %v1788 = vpop.f32.mrb[0].mxu0
      %v1789 = vadd.f32 %v1736, %v1788
      %v1790 = vpop.f32.mrb[0].mxu0
      %v1791 = vpop.f32.mrb[0].mxu0
      %v1792 = vpop.f32.mrb[0].mxu0
      %1793 = vdwg.mxu0
      %v1794 = vpack.c.bf16 %v1789, %v1789
      %v1795 = vld [vmem:[%s18] sm:$0xf]
      %v1796 = vld [vmem:[%s18 + $0x4] sm:$0xf]
      %v1797 = vld [vmem:[%s18 + $0x8] sm:$0xf]
      %v1798 = vld [vmem:[%s18 + $0xc] sm:$0xf]
      %v1799 = vld [vmem:[%s18 + $0x10] sm:$0xf]
      %v1800 = vld [vmem:[%s18 + $0x14] sm:$0xf]
      %v1801 = vld [vmem:[%s18 + $0x18] sm:$0xf]
      %v1802 = vld [vmem:[%s18 + $0x1c] sm:$0xf]
      %v1803 = vld [vmem:[%s18 + $0x20] sm:$0xf]
      %v1804 = vld [vmem:[%s18 + $0x24] sm:$0xf]
      %v1805 = vld [vmem:[%s18 + $0x28] sm:$0xf]
      %v1806 = vld [vmem:[%s18 + $0x2c] sm:$0xf]
      %v1807 = vld [vmem:[%s18 + $0x30] sm:$0xf]
      %v1808 = vld [vmem:[%s18 + $0x34] sm:$0xf]
      %v1809 = vld [vmem:[%s18 + $0x38] sm:$0xf]
      %v1810 = vld [vmem:[%s18 + $0x3c] sm:$0xf]
      %v1811 = vld [vmem:[%s19] sm:$0xf]
      %v1812 = vld [vmem:[%s19 + $0x4] sm:$0xf]
      %v1813 = vld [vmem:[%s19 + $0x8] sm:$0xf]
      %v1814 = vld [vmem:[%s19 + $0xc] sm:$0xf]
      %v1819 = vunpack.c.l.b16 %v1811
      %v1820 = vunpack.c.l.b16 %v1812
      %v1821 = vunpack.c.l.b16 %v1813
      %v1822 = vunpack.c.l.b16 %v1814
      %v1823 = vpack.c.b16 %v1820, %v1819
      %v1824 = vpack.c.b16 %v1822, %v1821
      %1827 = vmatprep.subr.bf16.mxu0 0
      %1828 = vmatpush1.bf16.msra.mxu0 %v1823
      %1829 = vmatprep.subr.bf16.mxu0 0
      %1830 = vmatpush1.bf16.msra.mxu0 %v1824
      %1831 = vmatprep.subr.bf16.mxu0 0
      %1832 = vmatpush1.bf16.msra.mxu0 0
      %1833 = vmatprep.subr.bf16.mxu0 0
      %1834 = vmatpush1.bf16.msra.mxu0 0
      %1835 = vmatprep.subr.bf16.mxu0 0
      %1836 = vmatpush1.bf16.msra.mxu0 0
      %1837 = vmatprep.subr.bf16.mxu0 0
      %1838 = vmatpush1.bf16.msra.mxu0 0
      %1839 = vmatprep.subr.bf16.mxu0 0
      %1840 = vmatpush1.bf16.msra.mxu0 0
      %1841 = vmatprep.subr.bf16.mxu0 0
      %1842 = vmatpush1.bf16.msra.mxu0 0
      %1843 = vmatprep.subr.bf16.mxu0 0
      %1844 = vmatpush1.bf16.msra.mxu0 0
      %1845 = vmatprep.subr.bf16.mxu0 0
      %1846 = vmatpush1.bf16.msra.mxu0 0
      %1847 = vmatprep.subr.bf16.mxu0 0
      %1848 = vmatpush1.bf16.msra.mxu0 0
      %1849 = vmatprep.subr.bf16.mxu0 0
      %1850 = vmatpush1.bf16.msra.mxu0 0
      %1851 = vmatprep.subr.bf16.mxu0 0
      %1852 = vmatpush1.bf16.msra.mxu0 0
      %1853 = vmatprep.subr.bf16.mxu0 0
      %1854 = vmatpush1.bf16.msra.mxu0 0
      %1855 = vmatprep.subr.bf16.mxu0 0
      %1856 = vmatpush1.bf16.msra.mxu0 0
      %1857 = vmatprep.subr.bf16.mxu0 0
      %1858 = vmatpush1.bf16.msra.mxu0 0
      %1859 = vmatprep.mubr.bf16.mxu0 0
      %1860 = vmatmul.mubr.bf16.gmra.mrb[0].mxu0 %v1752
      %v1861 = vpop.f32.mrb[0].mxu0
      %v1862 = vadd.f32 0.0, %v1861
      %v1863 = vpop.f32.mrb[0].mxu0
      %v1864 = vpop.f32.mrb[0].mxu0
      %v1865 = vpop.f32.mrb[0].mxu0
      %1866 = vdwg.mxu0
      %v1883 = vunpack.c.l.b16 %v1795
      %v1884 = vunpack.c.l.b16 %v1796
      %v1885 = vunpack.c.l.b16 %v1797
      %v1886 = vunpack.c.l.b16 %v1798
      %v1887 = vunpack.c.l.b16 %v1799
      %v1888 = vunpack.c.l.b16 %v1800
      %v1889 = vunpack.c.l.b16 %v1801
      %v1890 = vunpack.c.l.b16 %v1802
      %v1891 = vunpack.c.l.b16 %v1803
      %v1892 = vunpack.c.l.b16 %v1804
      %v1893 = vunpack.c.l.b16 %v1805
      %v1894 = vunpack.c.l.b16 %v1806
      %v1895 = vunpack.c.l.b16 %v1807
      %v1896 = vunpack.c.l.b16 %v1808
      %v1897 = vunpack.c.l.b16 %v1809
      %v1898 = vunpack.c.l.b16 %v1810
      %v1899 = vpack.c.b16 %v1884, %v1883
      %v1900 = vpack.c.b16 %v1886, %v1885
      %v1901 = vpack.c.b16 %v1888, %v1887
      %v1902 = vpack.c.b16 %v1890, %v1889
      %v1903 = vpack.c.b16 %v1892, %v1891
      %v1904 = vpack.c.b16 %v1894, %v1893
      %v1905 = vpack.c.b16 %v1896, %v1895
      %v1906 = vpack.c.b16 %v1898, %v1897
      %1915 = vmatprep.subr.bf16.mxu0 0
      %1916 = vmatpush1.bf16.msra.mxu0 %v1899
      %1917 = vmatprep.subr.bf16.mxu0 0
      %1918 = vmatpush1.bf16.msra.mxu0 %v1900
      %1919 = vmatprep.subr.bf16.mxu0 0
      %1920 = vmatpush1.bf16.msra.mxu0 %v1901
      %1921 = vmatprep.subr.bf16.mxu0 0
      %1922 = vmatpush1.bf16.msra.mxu0 %v1902
      %1923 = vmatprep.subr.bf16.mxu0 0
      %1924 = vmatpush1.bf16.msra.mxu0 %v1903
      %1925 = vmatprep.subr.bf16.mxu0 0
      %1926 = vmatpush1.bf16.msra.mxu0 %v1904
      %1927 = vmatprep.subr.bf16.mxu0 0
      %1928 = vmatpush1.bf16.msra.mxu0 %v1905
      %1929 = vmatprep.subr.bf16.mxu0 0
      %1930 = vmatpush1.bf16.msra.mxu0 %v1906
      %1931 = vmatprep.subr.bf16.mxu0 0
      %1932 = vmatpush1.bf16.msra.mxu0 0
      %1933 = vmatprep.subr.bf16.mxu0 0
      %1934 = vmatpush1.bf16.msra.mxu0 0
      %1935 = vmatprep.subr.bf16.mxu0 0
      %1936 = vmatpush1.bf16.msra.mxu0 0
      %1937 = vmatprep.subr.bf16.mxu0 0
      %1938 = vmatpush1.bf16.msra.mxu0 0
      %1939 = vmatprep.subr.bf16.mxu0 0
      %1940 = vmatpush1.bf16.msra.mxu0 0
      %1941 = vmatprep.subr.bf16.mxu0 0
      %1942 = vmatpush1.bf16.msra.mxu0 0
      %1943 = vmatprep.subr.bf16.mxu0 0
      %1944 = vmatpush1.bf16.msra.mxu0 0
      %1945 = vmatprep.subr.bf16.mxu0 0
      %1946 = vmatpush1.bf16.msra.mxu0 0
      %1947 = vmatprep.mubr.bf16.mxu0 0
      %1948 = vmatmul.mubr.bf16.gmra.mrb[0].mxu0 %v1794
      %v1949 = vpop.f32.mrb[0].mxu0
      %v1950 = vadd.f32 %v1862, %v1949
      %v1951 = vpop.f32.mrb[0].mxu0
      %v1952 = vpop.f32.mrb[0].mxu0
      %v1953 = vpop.f32.mrb[0].mxu0
      %1954 = vdwg.mxu0
      %v1955 = vld [vmem:[%s20] sm:$0x1]
      %v1956 = vadd.f32 %v1950, %v1955
      %v1957 = vpack.c.bf16 %v1956, %v1956
      %v1958 = vld [vmem:[%s21] sm:$0xf]
      %v1959 = vld [vmem:[%s21 + $0x4] sm:$0xf]
      %v1960 = vld [vmem:[%s21 + $0x8] sm:$0xf]
      %v1961 = vld [vmem:[%s21 + $0xc] sm:$0xf]
      %v1962 = vld [vmem:[%s21 + $0x10] sm:$0xf]
      %v1963 = vld [vmem:[%s21 + $0x14] sm:$0xf]
      %v1964 = vld [vmem:[%s21 + $0x18] sm:$0xf]
      %v1965 = vld [vmem:[%s21 + $0x1c] sm:$0xf]
      %v1966 = vld [vmem:[%s21 + $0x20] sm:$0xf]
      %v1967 = vld [vmem:[%s21 + $0x24] sm:$0xf]
      %v1968 = vld [vmem:[%s21 + $0x28] sm:$0xf]
      %v1969 = vld [vmem:[%s21 + $0x2c] sm:$0xf]
      %v1970 = vld [vmem:[%s21 + $0x30] sm:$0xf]
      %v1971 = vld [vmem:[%s21 + $0x34] sm:$0xf]
      %v1972 = vld [vmem:[%s21 + $0x38] sm:$0xf]
      %v1973 = vld [vmem:[%s21 + $0x3c] sm:$0xf]
      %v1974 = vld [vmem:[%s22] sm:$0xf]
      %v1975 = vld [vmem:[%s22 + $0x4] sm:$0xf]
      %v1976 = vld [vmem:[%s22 + $0x8] sm:$0xf]
      %v1977 = vld [vmem:[%s22 + $0xc] sm:$0xf]
      %v1982 = vunpack.c.l.b16 %v1974
      %v1983 = vunpack.c.l.b16 %v1975
      %v1984 = vunpack.c.l.b16 %v1976
      %v1985 = vunpack.c.l.b16 %v1977
      %v1986 = vpack.c.b16 %v1983, %v1982
      %v1987 = vpack.c.b16 %v1985, %v1984
      %1990 = vmatprep.subr.bf16.mxu0 0
      %1991 = vmatpush1.bf16.msra.mxu0 %v1986
      %1992 = vmatprep.subr.bf16.mxu0 0
      %1993 = vmatpush1.bf16.msra.mxu0 %v1987
      %1994 = vmatprep.subr.bf16.mxu0 0
      %1995 = vmatpush1.bf16.msra.mxu0 0
      %1996 = vmatprep.subr.bf16.mxu0 0
      %1997 = vmatpush1.bf16.msra.mxu0 0
      %1998 = vmatprep.subr.bf16.mxu0 0
      %1999 = vmatpush1.bf16.msra.mxu0 0
      %2000 = vmatprep.subr.bf16.mxu0 0
      %2001 = vmatpush1.bf16.msra.mxu0 0
      %2002 = vmatprep.subr.bf16.mxu0 0
      %2003 = vmatpush1.bf16.msra.mxu0 0
      %2004 = vmatprep.subr.bf16.mxu0 0
      %2005 = vmatpush1.bf16.msra.mxu0 0
      %2006 = vmatprep.subr.bf16.mxu0 0
      %2007 = vmatpush1.bf16.msra.mxu0 0
      %2008 = vmatprep.subr.bf16.mxu0 0
      %2009 = vmatpush1.bf16.msra.mxu0 0
      %2010 = vmatprep.subr.bf16.mxu0 0
      %2011 = vmatpush1.bf16.msra.mxu0 0
      %2012 = vmatprep.subr.bf16.mxu0 0
      %2013 = vmatpush1.bf16.msra.mxu0 0
      %2014 = vmatprep.subr.bf16.mxu0 0
      %2015 = vmatpush1.bf16.msra.mxu0 0
      %2016 = vmatprep.subr.bf16.mxu0 0
      %2017 = vmatpush1.bf16.msra.mxu0 0
      %2018 = vmatprep.subr.bf16.mxu0 0
      %2019 = vmatpush1.bf16.msra.mxu0 0
      %2020 = vmatprep.subr.bf16.mxu0 0
      %2021 = vmatpush1.bf16.msra.mxu0 0
      %2022 = vmatprep.mubr.bf16.mxu0 0
      %2023 = vmatmul.mubr.bf16.gmra.mrb[0].mxu0 %v1752
      %v2024 = vpop.f32.mrb[0].mxu0
      %v2025 = vadd.f32 0.0, %v2024
      %v2026 = vpop.f32.mrb[0].mxu0
      %v2027 = vpop.f32.mrb[0].mxu0
      %v2028 = vpop.f32.mrb[0].mxu0
      %2029 = vdwg.mxu0
      %v2046 = vunpack.c.l.b16 %v1958
      %v2047 = vunpack.c.l.b16 %v1959
      %v2048 = vunpack.c.l.b16 %v1960
      %v2049 = vunpack.c.l.b16 %v1961
      %v2050 = vunpack.c.l.b16 %v1962
      %v2051 = vunpack.c.l.b16 %v1963
      %v2052 = vunpack.c.l.b16 %v1964
      %v2053 = vunpack.c.l.b16 %v1965
      %v2054 = vunpack.c.l.b16 %v1966
      %v2055 = vunpack.c.l.b16 %v1967
      %v2056 = vunpack.c.l.b16 %v1968
      %v2057 = vunpack.c.l.b16 %v1969
      %v2058 = vunpack.c.l.b16 %v1970
      %v2059 = vunpack.c.l.b16 %v1971
      %v2060 = vunpack.c.l.b16 %v1972
      %v2061 = vunpack.c.l.b16 %v1973
      %v2062 = vpack.c.b16 %v2047, %v2046
      %v2063 = vpack.c.b16 %v2049, %v2048
      %v2064 = vpack.c.b16 %v2051, %v2050
      %v2065 = vpack.c.b16 %v2053, %v2052
      %v2066 = vpack.c.b16 %v2055, %v2054
      %v2067 = vpack.c.b16 %v2057, %v2056
      %v2068 = vpack.c.b16 %v2059, %v2058
      %v2069 = vpack.c.b16 %v2061, %v2060
      %2078 = vmatprep.subr.bf16.mxu0 0
      %2079 = vmatpush1.bf16.msra.mxu0 %v2062
      %2080 = vmatprep.subr.bf16.mxu0 0
      %2081 = vmatpush1.bf16.msra.mxu0 %v2063
      %2082 = vmatprep.subr.bf16.mxu0 0
      %2083 = vmatpush1.bf16.msra.mxu0 %v2064
      %2084 = vmatprep.subr.bf16.mxu0 0
      %2085 = vmatpush1.bf16.msra.mxu0 %v2065
      %2086 = vmatprep.subr.bf16.mxu0 0
      %2087 = vmatpush1.bf16.msra.mxu0 %v2066
      %2088 = vmatprep.subr.bf16.mxu0 0
      %2089 = vmatpush1.bf16.msra.mxu0 %v2067
      %2090 = vmatprep.subr.bf16.mxu0 0
      %2091 = vmatpush1.bf16.msra.mxu0 %v2068
      %2092 = vmatprep.subr.bf16.mxu0 0
      %2093 = vmatpush1.bf16.msra.mxu0 %v2069
      %2094 = vmatprep.subr.bf16.mxu0 0
      %2095 = vmatpush1.bf16.msra.mxu0 0
      %2096 = vmatprep.subr.bf16.mxu0 0
      %2097 = vmatpush1.bf16.msra.mxu0 0
      %2098 = vmatprep.subr.bf16.mxu0 0
      %2099 = vmatpush1.bf16.msra.mxu0 0
      %2100 = vmatprep.subr.bf16.mxu0 0
      %2101 = vmatpush1.bf16.msra.mxu0 0
      %2102 = vmatprep.subr.bf16.mxu0 0
      %2103 = vmatpush1.bf16.msra.mxu0 0
      %2104 = vmatprep.subr.bf16.mxu0 0
      %2105 = vmatpush1.bf16.msra.mxu0 0
      %2106 = vmatprep.subr.bf16.mxu0 0
      %2107 = vmatpush1.bf16.msra.mxu0 0
      %2108 = vmatprep.subr.bf16.mxu0 0
      %2109 = vmatpush1.bf16.msra.mxu0 0
      %2110 = vmatprep.mubr.bf16.mxu0 0
      %2111 = vmatmul.mubr.bf16.gmra.mrb[0].mxu0 %v1957
      %v2112 = vpop.f32.mrb[0].mxu0
      %v2113 = vadd.f32 %v2025, %v2112
      %v2114 = vpop.f32.mrb[0].mxu0
      %v2115 = vpop.f32.mrb[0].mxu0
      %v2116 = vpop.f32.mrb[0].mxu0
      %2117 = vdwg.mxu0
      %v2118 = vld [vmem:[%s23] sm:$0x1]
      %v2119 = vadd.f32 %v2113, %v2118
      %v2121 = vrot.slane %v1956, 7
      %v2124 = vrot.slane %v2119, 6
      %vm2126 = vcmask 1040384
      %v2127 = vsel %vm2126, %v1789, %v2121
      %vm2128 = vcmask 1041408
      %v2129 = vsel %vm2128, %v2127, %v2124
      %vm2130 = vcmask 1042432
      %v2131 = vsel %vm2130, %v2129, 0.0
      %2132 = vst [vmem:[%s735] sm:$0xff] %v2131
      %p2133 = scmp.lt.s32.totalorder %s35, 1
      %s2134 = scalar_select %p2133, %s35, 1
      %s2135 = smul.addr %s2134, 8
      %s2136 = scalar_lea.vmem %s24, %s2135
      // Predicated region
      $region117: #{trans_mehta_forward.1} parent=115 // pred_check
        %p2137 = pneg %p562
      $region118: #{trans_mehta_forward.1} parent=115 // pred_check_branch
        %2139 = sbr.rel (%p2137) target = $region120
      $region119: #{trans_mehta_forward.1} parent=115 // pred_region
        _
      $region120: #{trans_mehta_forward.1} parent=115 // pred_fallthru
        _
    $region116: #{trans_mehta_forward.1} parent=5 // pred_fallthru
      _
    %p2140 = scmp.le.s32.totalorder 2, %s30
    // Predicated region
    $region121: #{trans_mehta_forward.1} parent=5 // pred_check
      %p2141 = pneg %p2140
    $region122: #{trans_mehta_forward.1} parent=5 // pred_check_branch
      %2143 = sbr.rel (%p2141) target = $region124
    $region123: #{trans_mehta_forward.1} parent=5 // pred_region
      %s2144 = ssub.s32 %s30, 2
      // Predicated region
      $region125: #{trans_mehta_forward.1} parent=123 // pred_check
        %p2145 = pneg %p568
      $region126: #{trans_mehta_forward.1} parent=123 // pred_check_branch
        %2147 = sbr.rel (%p2145) target = $region128
      $region127: #{trans_mehta_forward.1} parent=123 // pred_region
        %p2148 = scmp.lt.s32.totalorder %s36, 1
        %s2149 = scalar_select %p2148, %s36, 1
        %s2150 = smul.addr %s2149, 8
        %s2151 = scalar_lea.vmem %s24, %s2150
      $region128: #{trans_mehta_forward.1} parent=123 // pred_fallthru
        _
    $region124: #{trans_mehta_forward.1} parent=5 // pred_fallthru
      _
  $region6: #{trans_mehta_forward.1} parent=0 // loop_footer
    %s34 = sadd.s32 1, %s30
  $region7: #{trans_mehta_forward.1} parent=0 // loop_footer_branch
    %29 = sbr.rel target = $region3
  $region8: #{trans_mehta_forward.1} parent=0 // loop_exit
    _

</llo_original>
